<compile_context>
chip_gen: v7x
topology: tpu7x:2x2x1
jax: 0.10.0
libtpu: 0.0.40
codegen_flags: <defaults>
</compile_context>

<pallas_src>
import functools

import jax
import jax.numpy as jnp
from jax.experimental import pallas as pl
from jax.experimental.pallas import tpu as pltpu


def _round_up(x, m):
    return ((x + m - 1) // m) * m


def gru_kernel(gi_ref, whh_ref, bhh_ref, hs_ref, h_ref, *, chunk, seq_len):
    """One grid step == one chunk of `chunk` GRU timesteps.

    gi_ref:  (3, Tc, B, H)  precomputed x_t @ W_ih^T + b_ih, gate-major (f32)
    whh_ref: (3, H, H)      per-gate W_hh^T (bf16 MXU operand)
    bhh_ref: (3, 1, H)      per-gate b_hh (f32)
    hs_ref:  (Tc, B, H)     output hidden states for this chunk (f32)
    h_ref:   (1, B, H)      final hidden state; constant index_map => resident in
                            VMEM across grid steps and used directly as the carry.
    """
    c = pl.program_id(0)

    @pl.when(c == 0)
    def _init():
        h_ref[...] = jnp.zeros_like(h_ref)

    def step(s, h_prev):
        # Recurrent matmuls: bf16 operands, f32 accumulation on the MXU.
        h_mx = h_prev.astype(whh_ref.dtype)
        gh_r = jnp.dot(h_mx, whh_ref[0], preferred_element_type=jnp.float32) + bhh_ref[0]
        gh_z = jnp.dot(h_mx, whh_ref[1], preferred_element_type=jnp.float32) + bhh_ref[1]
        gh_n = jnp.dot(h_mx, whh_ref[2], preferred_element_type=jnp.float32) + bhh_ref[2]

        # Gate math kept in f32 (v5e VPU/EUP have no bf16 path).
        r = jax.nn.sigmoid(gi_ref[0, s] + gh_r)
        z = jax.nn.sigmoid(gi_ref[1, s] + gh_z)
        n = jnp.tanh(gi_ref[2, s] + r * gh_n)
        h_new = (1.0 - z) * n + z * h_prev

        # Time padding (T_pad >= T): padded steps must not advance the carry.
        t_global = c * chunk + s
        h_new = jnp.where(t_global < seq_len, h_new, h_prev)

        hs_ref[s] = h_new
        return h_new

    h_last = jax.lax.fori_loop(0, chunk, step, h_ref[0], unroll=True)
    h_ref[0] = h_last


def gru_pallas(gi, whh_gt, bhh_g, *, seq_len, chunk):
    """gi: (3, T_pad, B_pad, H_pad) f32; whh_gt: (3, H_pad, H_pad) bf16;
    bhh_g: (3, 1, H_pad) f32.  Returns hs (T_pad, B_pad, H_pad), h (1, B_pad, H_pad)."""
    _, t_pad, b_pad, h_pad = gi.shape
    n_chunks = t_pad // chunk

    kernel = functools.partial(gru_kernel, chunk=chunk, seq_len=seq_len)

    hs, h = pl.pallas_call(
        kernel,
        out_shape=(
            jax.ShapeDtypeStruct((t_pad, b_pad, h_pad), jnp.float32),
            jax.ShapeDtypeStruct((1, b_pad, h_pad), jnp.float32),
        ),
        grid_spec=pltpu.PrefetchScalarGridSpec(
            num_scalar_prefetch=0,
            grid=(n_chunks,),
            in_specs=[
                # GI chunk: streamed / double-buffered over the time axis.
                pl.BlockSpec((3, chunk, b_pad, h_pad), lambda c: (0, c, 0, 0)),
                # Recurrent weights & biases: constant index_map (resident).
                # TODO(synk): at large H, single-buffer these (pl.Buffered(1) or a
                # one-time sync_copy from pl.ANY) to halve their VMEM footprint.
                pl.BlockSpec((3, h_pad, h_pad), lambda c: (0, 0, 0)),
                pl.BlockSpec((3, 1, h_pad), lambda c: (0, 0, 0)),
            ],
            out_specs=[
                pl.BlockSpec((chunk, b_pad, h_pad), lambda c: (c, 0, 0)),
                pl.BlockSpec((1, b_pad, h_pad), lambda c: (0, 0, 0)),  # carry/result
            ],
        ),
        compiler_params=pltpu.CompilerParams(
            # Recurrence over time => sequential grid.  (On v7x a leading
            # "parallel" batch-shard axis could use the second TensorCore.)
            dimension_semantics=("arbitrary",),
        ),
    )(gi, whh_gt, bhh_g)
    return hs, h


def encoder_forward(sequence, params, *, chunk=4):
    """sequence: (B, T) int32 token ids.  Mirrors Encoder.forward: returns
    hs (B, T, H) and h (1, B, H), both float32."""
    emb_table = params["embedding"]           # (V, E), row 0 == 0 (padding_idx)
    w_ih = params["w_ih"]                     # (3H, E)  gate order r, z, n
    w_hh = params["w_hh"]                     # (3H, H)
    b_ih = params["b_ih"]                     # (3H,)
    b_hh = params["b_hh"]                     # (3H,)

    B, T = sequence.shape
    H = w_hh.shape[1]

    chunk = max(1, min(chunk, T))
    T_pad = _round_up(T, chunk)
    B_pad = _round_up(B, 8)                   # f32 sublane minimum
    H_pad = _round_up(H, 128)                 # lane width (lane-dense stores)

    # --- embedding lookup (data-dependent gather; glue op in the wrapper) ---
    emb = jnp.take(emb_table, sequence, axis=0)                  # (B, T, E)

    # --- hoisted input projection: one big batched matmul (no seq dependency) ---
    wih_gt = jnp.transpose(w_ih.reshape(3, H, -1), (0, 2, 1))    # (3, E, H)
    gi = jnp.einsum(
        "bte,geh->gtbh",
        emb.astype(jnp.bfloat16),
        wih_gt.astype(jnp.bfloat16),
        preferred_element_type=jnp.float32,
    )                                                            # (3, T, B, H)
    gi = gi + b_ih.reshape(3, 1, 1, H)
    gi = jnp.pad(gi, ((0, 0), (0, T_pad - T), (0, B_pad - B), (0, H_pad - H)))

    # --- per-gate recurrent weights / biases, zero-padded to (H_pad, H_pad) ---
    whh_gt = jnp.transpose(w_hh.reshape(3, H, H), (0, 2, 1))     # (3, H_in, H_out)
    whh_gt = jnp.pad(whh_gt, ((0, 0), (0, H_pad - H), (0, H_pad - H)))
    whh_gt = whh_gt.astype(jnp.bfloat16)
    bhh_g = jnp.pad(b_hh.reshape(3, 1, H), ((0, 0), (0, 0), (0, H_pad - H)))

    hs_pad, h_pad = gru_pallas(gi, whh_gt, bhh_g, seq_len=T, chunk=chunk)

    hs = jnp.transpose(hs_pad[:T, :B, :H], (1, 0, 2))            # (B, T, H)
    h = h_pad[:, :B, :H]                                         # (1, B, H)
    return hs, h


def init_params(key, vocab_size, embedding_dim, hidden_dim):
    k_emb, k_wih, k_whh, k_bih, k_bhh = jax.random.split(key, 5)
    emb = jax.random.normal(k_emb, (vocab_size, embedding_dim), jnp.float32)
    emb = emb.at[0].set(0.0)                              # padding_idx=0
    bound = 1.0 / jnp.sqrt(hidden_dim)
    u = lambda k, s: jax.random.uniform(k, s, jnp.float32, -bound, bound)
    return {
        "embedding": emb,
        "w_ih": u(k_wih, (3 * hidden_dim, embedding_dim)),
        "w_hh": u(k_whh, (3 * hidden_dim, hidden_dim)),
        "b_ih": u(k_bih, (3 * hidden_dim,)),
        "b_hh": u(k_bhh, (3 * hidden_dim,)),
    }


def _reference_gru(x_tm, w_ih, w_hh, b_ih, b_hh):
    """Pure-JAX f32 reference (lax.scan) for a sanity check."""
    H = w_hh.shape[1]

    def step(h_prev, x_t):
        gi = x_t @ w_ih.T + b_ih
        gh = h_prev @ w_hh.T + b_hh
        i_r, i_z, i_n = jnp.split(gi, 3, axis=-1)
        h_r, h_z, h_n = jnp.split(gh, 3, axis=-1)
        r = jax.nn.sigmoid(i_r + h_r)
        z = jax.nn.sigmoid(i_z + h_z)
        n = jnp.tanh(i_n + r * h_n)
        h_new = (1.0 - z) * n + z * h_prev
        return h_new, h_new

    B = x_tm.shape[1]
    h0 = jnp.zeros((B, H), jnp.float32)
    h_last, hs = jax.lax.scan(step, h0, x_tm)
    return hs, h_last[None]


if __name__ == "__main__":
    vocab_size, embedding_dim, hidden_dim = 11, 16, 32
    batch, seq_len = 2, 8

    key = jax.random.PRNGKey(0)
    k_params, k_seq = jax.random.split(key)
    params = init_params(k_params, vocab_size, embedding_dim, hidden_dim)
    sequence = jax.random.randint(k_seq, (batch, seq_len), 0, vocab_size,
                                  dtype=jnp.int32)

    hs, h = jax.jit(encoder_forward)(sequence, params)
    jax.block_until_ready((hs, h))

    # sanity check against pure-JAX f32 reference (bf16 MXU operands => loose tol)
    emb = jnp.take(params["embedding"], sequence, axis=0)
    hs_ref_tm, h_ref = _reference_gru(jnp.transpose(emb, (1, 0, 2)),
                                      params["w_ih"], params["w_hh"],
                                      params["b_ih"], params["b_hh"])
    hs_ref = jnp.transpose(hs_ref_tm, (1, 0, 2))
    assert hs.shape == (batch, seq_len, hidden_dim)
    assert h.shape == (1, batch, hidden_dim)
    assert jnp.allclose(hs, hs_ref, atol=5e-2), "hs mismatch vs reference"
    assert jnp.allclose(h, h_ref, atol=5e-2), "h mismatch vs reference"

    print("KERNEL_OK")
</pallas_src>

<mosaic_0001>
module attributes {stable_mosaic.version = 11 : i64} {
  func.func @gru_kernel(%arg0: i32, %arg1: memref<3x4x8x128xf32, #tpu.memory_space<vmem>>, %arg2: memref<3x128x128xbf16, #tpu.memory_space<vmem>>, %arg3: memref<3x1x128xf32, #tpu.memory_space<vmem>>, %arg4: memref<4x8x128xf32, #tpu.memory_space<vmem>>, %arg5: memref<1x8x128xf32, #tpu.memory_space<vmem>>) attributes {dimension_semantics = [#tpu.dimension_semantics<arbitrary>], iteration_bounds = array<i64: 2>, scalar_prefetch = 0 : i64, scratch_operands = 0 : i64, tpu.core_type = #tpu.core_type<tc>, window_params = [{transform_indices = @transform_0, window_bounds = array<i64: 3, 4, 8, 128>}, {pipeline_mode = #tpu.pipeline_mode<synchronous>, transform_indices = @transform_1, window_bounds = array<i64: 3, 128, 128>}, {pipeline_mode = #tpu.pipeline_mode<synchronous>, transform_indices = @transform_2, window_bounds = array<i64: 3, 1, 128>}, {transform_indices = @transform_3, window_bounds = array<i64: 4, 8, 128>}, {pipeline_mode = #tpu.pipeline_mode<synchronous>, transform_indices = @transform_4, window_bounds = array<i64: 1, 8, 128>}]} {
    %c0_i32 = arith.constant 0 : i32
    %0 = arith.cmpi eq, %arg0, %c0_i32 : i32
    %1 = arith.extui %0 : i1 to i32
    %c0_i32_0 = arith.constant 0 : i32
    %2 = arith.cmpi ne, %1, %c0_i32_0 : i32
    scf.if %2 {
      %cst_151 = arith.constant 0.000000e+00 : f32
      %244 = vector.broadcast %cst_151 : f32 to vector<1x8x128xf32>
      %c0_152 = arith.constant 0 : index
      %c0_153 = arith.constant 0 : index
      %c0_154 = arith.constant 0 : index
      %245 = vector.load %arg5[%c0_152, %c0_153, %c0_154] : memref<1x8x128xf32, #tpu.memory_space<vmem>>, vector<1x8x128xf32>
      tpu.vector_store %arg5[%c0_152, %c0_153, %c0_154], %244 {strides = array<i32>} : memref<1x8x128xf32, #tpu.memory_space<vmem>>, vector<1x8x128xf32>,
    } else {
    }
    %c0 = arith.constant 0 : index
    %c0_1 = arith.constant 0 : index
    %c0_2 = arith.constant 0 : index
    %3 = vector.load %arg5[%c0, %c0_1, %c0_2] : memref<1x8x128xf32, #tpu.memory_space<vmem>>, vector<1x8x128xf32>
    %4 = vector.shape_cast %3 : vector<1x8x128xf32> to vector<8x128xf32>
    %c0_i32_3 = arith.constant 0 : i32
    %5 = arith.truncf %4 : vector<8x128xf32> to vector<8x128xbf16>
    %c0_4 = arith.constant 0 : index
    %c0_5 = arith.constant 0 : index
    %c0_6 = arith.constant 0 : index
    %6 = vector.load %arg2[%c0_4, %c0_5, %c0_6] : memref<3x128x128xbf16, #tpu.memory_space<vmem>>, vector<1x128x128xbf16>
    %7 = vector.shape_cast %6 : vector<1x128x128xbf16> to vector<128x128xbf16>
    %cst = arith.constant dense<0.000000e+00> : vector<8x128xf32>
    %8 = tpu.matmul %5, %7, %cst {dimension_numbers = #tpu.dot_dimension_numbers<[1], [0], [0], [1], [0, 0, 1, 1], [], []>} : vector<8x128xbf16>, vector<128x128xbf16>, vector<8x128xf32> -> vector<8x128xf32>
    %c0_7 = arith.constant 0 : index
    %c0_8 = arith.constant 0 : index
    %c0_9 = arith.constant 0 : index
    %9 = vector.load %arg3[%c0_7, %c0_8, %c0_9] : memref<3x1x128xf32, #tpu.memory_space<vmem>>, vector<1x1x128xf32>
    %10 = vector.shape_cast %9 : vector<1x1x128xf32> to vector<1x128xf32>
    %11 = vector.broadcast %10 : vector<1x128xf32> to vector<8x128xf32>
    %12 = arith.addf %8, %11 : vector<8x128xf32>
    %c1 = arith.constant 1 : index
    %c0_10 = arith.constant 0 : index
    %c0_11 = arith.constant 0 : index
    %13 = vector.load %arg2[%c1, %c0_10, %c0_11] : memref<3x128x128xbf16, #tpu.memory_space<vmem>>, vector<1x128x128xbf16>
    %14 = vector.shape_cast %13 : vector<1x128x128xbf16> to vector<128x128xbf16>
    %cst_12 = arith.constant dense<0.000000e+00> : vector<8x128xf32>
    %15 = tpu.matmul %5, %14, %cst_12 {dimension_numbers = #tpu.dot_dimension_numbers<[1], [0], [0], [1], [0, 0, 1, 1], [], []>} : vector<8x128xbf16>, vector<128x128xbf16>, vector<8x128xf32> -> vector<8x128xf32>
    %c1_13 = arith.constant 1 : index
    %c0_14 = arith.constant 0 : index
    %c0_15 = arith.constant 0 : index
    %16 = vector.load %arg3[%c1_13, %c0_14, %c0_15] : memref<3x1x128xf32, #tpu.memory_space<vmem>>, vector<1x1x128xf32>
    %17 = vector.shape_cast %16 : vector<1x1x128xf32> to vector<1x128xf32>
    %18 = vector.broadcast %17 : vector<1x128xf32> to vector<8x128xf32>
    %19 = arith.addf %15, %18 : vector<8x128xf32>
    %c2 = arith.constant 2 : index
    %c0_16 = arith.constant 0 : index
    %c0_17 = arith.constant 0 : index
    %20 = vector.load %arg2[%c2, %c0_16, %c0_17] : memref<3x128x128xbf16, #tpu.memory_space<vmem>>, vector<1x128x128xbf16>
    %21 = vector.shape_cast %20 : vector<1x128x128xbf16> to vector<128x128xbf16>
    %cst_18 = arith.constant dense<0.000000e+00> : vector<8x128xf32>
    %22 = tpu.matmul %5, %21, %cst_18 {dimension_numbers = #tpu.dot_dimension_numbers<[1], [0], [0], [1], [0, 0, 1, 1], [], []>} : vector<8x128xbf16>, vector<128x128xbf16>, vector<8x128xf32> -> vector<8x128xf32>
    %c2_19 = arith.constant 2 : index
    %c0_20 = arith.constant 0 : index
    %c0_21 = arith.constant 0 : index
    %23 = vector.load %arg3[%c2_19, %c0_20, %c0_21] : memref<3x1x128xf32, #tpu.memory_space<vmem>>, vector<1x1x128xf32>
    %24 = vector.shape_cast %23 : vector<1x1x128xf32> to vector<1x128xf32>
    %25 = vector.broadcast %24 : vector<1x128xf32> to vector<8x128xf32>
    %26 = arith.addf %22, %25 : vector<8x128xf32>
    %c0_22 = arith.constant 0 : index
    %27 = arith.index_cast %c0_i32_3 : i32 to index
    %c0_23 = arith.constant 0 : index
    %c0_24 = arith.constant 0 : index
    %28 = vector.load %arg1[%c0_22, %27, %c0_23, %c0_24] : memref<3x4x8x128xf32, #tpu.memory_space<vmem>>, vector<1x1x8x128xf32>
    %29 = vector.shape_cast %28 : vector<1x1x8x128xf32> to vector<8x128xf32>
    %30 = arith.addf %29, %12 : vector<8x128xf32>
    %31 = arith.negf %30 : vector<8x128xf32>
    %32 = math.exp %31 : vector<8x128xf32>
    %cst_25 = arith.constant 1.000000e+00 : f32
    %33 = vector.broadcast %cst_25 : f32 to vector<8x128xf32>
    %34 = arith.addf %33, %32 : vector<8x128xf32>
    %35 = arith.divf %33, %34 : vector<8x128xf32>
    %c1_26 = arith.constant 1 : index
    %36 = arith.index_cast %c0_i32_3 : i32 to index
    %c0_27 = arith.constant 0 : index
    %c0_28 = arith.constant 0 : index
    %37 = vector.load %arg1[%c1_26, %36, %c0_27, %c0_28] : memref<3x4x8x128xf32, #tpu.memory_space<vmem>>, vector<1x1x8x128xf32>
    %38 = vector.shape_cast %37 : vector<1x1x8x128xf32> to vector<8x128xf32>
    %39 = arith.addf %38, %19 : vector<8x128xf32>
    %40 = arith.negf %39 : vector<8x128xf32>
    %41 = math.exp %40 : vector<8x128xf32>
    %cst_29 = arith.constant 1.000000e+00 : f32
    %42 = vector.broadcast %cst_29 : f32 to vector<8x128xf32>
    %43 = arith.addf %42, %41 : vector<8x128xf32>
    %44 = arith.divf %42, %43 : vector<8x128xf32>
    %c2_30 = arith.constant 2 : index
    %45 = arith.index_cast %c0_i32_3 : i32 to index
    %c0_31 = arith.constant 0 : index
    %c0_32 = arith.constant 0 : index
    %46 = vector.load %arg1[%c2_30, %45, %c0_31, %c0_32] : memref<3x4x8x128xf32, #tpu.memory_space<vmem>>, vector<1x1x8x128xf32>
    %47 = vector.shape_cast %46 : vector<1x1x8x128xf32> to vector<8x128xf32>
    %48 = arith.mulf %35, %26 : vector<8x128xf32>
    %49 = arith.addf %47, %48 : vector<8x128xf32>
    %50 = math.tanh %49 : vector<8x128xf32>
    %cst_33 = arith.constant 1.000000e+00 : f32
    %51 = vector.broadcast %cst_33 : f32 to vector<8x128xf32>
    %52 = arith.subf %51, %44 : vector<8x128xf32>
    %53 = arith.mulf %52, %50 : vector<8x128xf32>
    %54 = arith.mulf %44, %4 : vector<8x128xf32>
    %55 = arith.addf %53, %54 : vector<8x128xf32>
    %c4_i32 = arith.constant 4 : i32
    %56 = arith.muli %arg0, %c4_i32 : i32
    %57 = arith.addi %56, %c0_i32_3 : i32
    %c8_i32 = arith.constant 8 : i32
    %58 = arith.cmpi slt, %57, %c8_i32 : i32
    %59 = arith.select %58, %55, %4 : vector<8x128xf32>
    %60 = arith.index_cast %c0_i32_3 : i32 to index
    %c0_34 = arith.constant 0 : index
    %c0_35 = arith.constant 0 : index
    %61 = vector.load %arg4[%60, %c0_34, %c0_35] : memref<4x8x128xf32, #tpu.memory_space<vmem>>, vector<1x8x128xf32>
    %62 = vector.shape_cast %61 : vector<1x8x128xf32> to vector<8x128xf32>
    %63 = vector.shape_cast %59 : vector<8x128xf32> to vector<1x8x128xf32>
    tpu.vector_store %arg4[%60, %c0_34, %c0_35], %63 {strides = array<i32>} : memref<4x8x128xf32, #tpu.memory_space<vmem>>, vector<1x8x128xf32>,
    %c1_i32 = arith.constant 1 : i32
    %64 = arith.truncf %59 : vector<8x128xf32> to vector<8x128xbf16>
    %c0_36 = arith.constant 0 : index
    %c0_37 = arith.constant 0 : index
    %c0_38 = arith.constant 0 : index
    %65 = vector.load %arg2[%c0_36, %c0_37, %c0_38] : memref<3x128x128xbf16, #tpu.memory_space<vmem>>, vector<1x128x128xbf16>
    %66 = vector.shape_cast %65 : vector<1x128x128xbf16> to vector<128x128xbf16>
    %cst_39 = arith.constant dense<0.000000e+00> : vector<8x128xf32>
    %67 = tpu.matmul %64, %66, %cst_39 {dimension_numbers = #tpu.dot_dimension_numbers<[1], [0], [0], [1], [0, 0, 1, 1], [], []>} : vector<8x128xbf16>, vector<128x128xbf16>, vector<8x128xf32> -> vector<8x128xf32>
    %c0_40 = arith.constant 0 : index
    %c0_41 = arith.constant 0 : index
    %c0_42 = arith.constant 0 : index
    %68 = vector.load %arg3[%c0_40, %c0_41, %c0_42] : memref<3x1x128xf32, #tpu.memory_space<vmem>>, vector<1x1x128xf32>
    %69 = vector.shape_cast %68 : vector<1x1x128xf32> to vector<1x128xf32>
    %70 = vector.broadcast %69 : vector<1x128xf32> to vector<8x128xf32>
    %71 = arith.addf %67, %70 : vector<8x128xf32>
    %c1_43 = arith.constant 1 : index
    %c0_44 = arith.constant 0 : index
    %c0_45 = arith.constant 0 : index
    %72 = vector.load %arg2[%c1_43, %c0_44, %c0_45] : memref<3x128x128xbf16, #tpu.memory_space<vmem>>, vector<1x128x128xbf16>
    %73 = vector.shape_cast %72 : vector<1x128x128xbf16> to vector<128x128xbf16>
    %cst_46 = arith.constant dense<0.000000e+00> : vector<8x128xf32>
    %74 = tpu.matmul %64, %73, %cst_46 {dimension_numbers = #tpu.dot_dimension_numbers<[1], [0], [0], [1], [0, 0, 1, 1], [], []>} : vector<8x128xbf16>, vector<128x128xbf16>, vector<8x128xf32> -> vector<8x128xf32>
    %c1_47 = arith.constant 1 : index
    %c0_48 = arith.constant 0 : index
    %c0_49 = arith.constant 0 : index
    %75 = vector.load %arg3[%c1_47, %c0_48, %c0_49] : memref<3x1x128xf32, #tpu.memory_space<vmem>>, vector<1x1x128xf32>
    %76 = vector.shape_cast %75 : vector<1x1x128xf32> to vector<1x128xf32>
    %77 = vector.broadcast %76 : vector<1x128xf32> to vector<8x128xf32>
    %78 = arith.addf %74, %77 : vector<8x128xf32>
    %c2_50 = arith.constant 2 : index
    %c0_51 = arith.constant 0 : index
    %c0_52 = arith.constant 0 : index
    %79 = vector.load %arg2[%c2_50, %c0_51, %c0_52] : memref<3x128x128xbf16, #tpu.memory_space<vmem>>, vector<1x128x128xbf16>
    %80 = vector.shape_cast %79 : vector<1x128x128xbf16> to vector<128x128xbf16>
    %cst_53 = arith.constant dense<0.000000e+00> : vector<8x128xf32>
    %81 = tpu.matmul %64, %80, %cst_53 {dimension_numbers = #tpu.dot_dimension_numbers<[1], [0], [0], [1], [0, 0, 1, 1], [], []>} : vector<8x128xbf16>, vector<128x128xbf16>, vector<8x128xf32> -> vector<8x128xf32>
    %c2_54 = arith.constant 2 : index
    %c0_55 = arith.constant 0 : index
    %c0_56 = arith.constant 0 : index
    %82 = vector.load %arg3[%c2_54, %c0_55, %c0_56] : memref<3x1x128xf32, #tpu.memory_space<vmem>>, vector<1x1x128xf32>
    %83 = vector.shape_cast %82 : vector<1x1x128xf32> to vector<1x128xf32>
    %84 = vector.broadcast %83 : vector<1x128xf32> to vector<8x128xf32>
    %85 = arith.addf %81, %84 : vector<8x128xf32>
    %c0_57 = arith.constant 0 : index
    %86 = arith.index_cast %c1_i32 : i32 to index
    %c0_58 = arith.constant 0 : index
    %c0_59 = arith.constant 0 : index
    %87 = vector.load %arg1[%c0_57, %86, %c0_58, %c0_59] : memref<3x4x8x128xf32, #tpu.memory_space<vmem>>, vector<1x1x8x128xf32>
    %88 = vector.shape_cast %87 : vector<1x1x8x128xf32> to vector<8x128xf32>
    %89 = arith.addf %88, %71 : vector<8x128xf32>
    %90 = arith.negf %89 : vector<8x128xf32>
    %91 = math.exp %90 : vector<8x128xf32>
    %cst_60 = arith.constant 1.000000e+00 : f32
    %92 = vector.broadcast %cst_60 : f32 to vector<8x128xf32>
    %93 = arith.addf %92, %91 : vector<8x128xf32>
    %94 = arith.divf %92, %93 : vector<8x128xf32>
    %c1_61 = arith.constant 1 : index
    %95 = arith.index_cast %c1_i32 : i32 to index
    %c0_62 = arith.constant 0 : index
    %c0_63 = arith.constant 0 : index
    %96 = vector.load %arg1[%c1_61, %95, %c0_62, %c0_63] : memref<3x4x8x128xf32, #tpu.memory_space<vmem>>, vector<1x1x8x128xf32>
    %97 = vector.shape_cast %96 : vector<1x1x8x128xf32> to vector<8x128xf32>
    %98 = arith.addf %97, %78 : vector<8x128xf32>
    %99 = arith.negf %98 : vector<8x128xf32>
    %100 = math.exp %99 : vector<8x128xf32>
    %cst_64 = arith.constant 1.000000e+00 : f32
    %101 = vector.broadcast %cst_64 : f32 to vector<8x128xf32>
    %102 = arith.addf %101, %100 : vector<8x128xf32>
    %103 = arith.divf %101, %102 : vector<8x128xf32>
    %c2_65 = arith.constant 2 : index
    %104 = arith.index_cast %c1_i32 : i32 to index
    %c0_66 = arith.constant 0 : index
    %c0_67 = arith.constant 0 : index
    %105 = vector.load %arg1[%c2_65, %104, %c0_66, %c0_67] : memref<3x4x8x128xf32, #tpu.memory_space<vmem>>, vector<1x1x8x128xf32>
    %106 = vector.shape_cast %105 : vector<1x1x8x128xf32> to vector<8x128xf32>
    %107 = arith.mulf %94, %85 : vector<8x128xf32>
    %108 = arith.addf %106, %107 : vector<8x128xf32>
    %109 = math.tanh %108 : vector<8x128xf32>
    %cst_68 = arith.constant 1.000000e+00 : f32
    %110 = vector.broadcast %cst_68 : f32 to vector<8x128xf32>
    %111 = arith.subf %110, %103 : vector<8x128xf32>
    %112 = arith.mulf %111, %109 : vector<8x128xf32>
    %113 = arith.mulf %103, %59 : vector<8x128xf32>
    %114 = arith.addf %112, %113 : vector<8x128xf32>
    %c4_i32_69 = arith.constant 4 : i32
    %115 = arith.muli %arg0, %c4_i32_69 : i32
    %116 = arith.addi %115, %c1_i32 : i32
    %c8_i32_70 = arith.constant 8 : i32
    %117 = arith.cmpi slt, %116, %c8_i32_70 : i32
    %118 = arith.select %117, %114, %59 : vector<8x128xf32>
    %119 = arith.index_cast %c1_i32 : i32 to index
    %c0_71 = arith.constant 0 : index
    %c0_72 = arith.constant 0 : index
    %120 = vector.load %arg4[%119, %c0_71, %c0_72] : memref<4x8x128xf32, #tpu.memory_space<vmem>>, vector<1x8x128xf32>
    %121 = vector.shape_cast %120 : vector<1x8x128xf32> to vector<8x128xf32>
    %122 = vector.shape_cast %118 : vector<8x128xf32> to vector<1x8x128xf32>
    tpu.vector_store %arg4[%119, %c0_71, %c0_72], %122 {strides = array<i32>} : memref<4x8x128xf32, #tpu.memory_space<vmem>>, vector<1x8x128xf32>,
    %c2_i32 = arith.constant 2 : i32
    %123 = arith.truncf %118 : vector<8x128xf32> to vector<8x128xbf16>
    %c0_73 = arith.constant 0 : index
    %c0_74 = arith.constant 0 : index
    %c0_75 = arith.constant 0 : index
    %124 = vector.load %arg2[%c0_73, %c0_74, %c0_75] : memref<3x128x128xbf16, #tpu.memory_space<vmem>>, vector<1x128x128xbf16>
    %125 = vector.shape_cast %124 : vector<1x128x128xbf16> to vector<128x128xbf16>
    %cst_76 = arith.constant dense<0.000000e+00> : vector<8x128xf32>
    %126 = tpu.matmul %123, %125, %cst_76 {dimension_numbers = #tpu.dot_dimension_numbers<[1], [0], [0], [1], [0, 0, 1, 1], [], []>} : vector<8x128xbf16>, vector<128x128xbf16>, vector<8x128xf32> -> vector<8x128xf32>
    %c0_77 = arith.constant 0 : index
    %c0_78 = arith.constant 0 : index
    %c0_79 = arith.constant 0 : index
    %127 = vector.load %arg3[%c0_77, %c0_78, %c0_79] : memref<3x1x128xf32, #tpu.memory_space<vmem>>, vector<1x1x128xf32>
    %128 = vector.shape_cast %127 : vector<1x1x128xf32> to vector<1x128xf32>
    %129 = vector.broadcast %128 : vector<1x128xf32> to vector<8x128xf32>
    %130 = arith.addf %126, %129 : vector<8x128xf32>
    %c1_80 = arith.constant 1 : index
    %c0_81 = arith.constant 0 : index
    %c0_82 = arith.constant 0 : index
    %131 = vector.load %arg2[%c1_80, %c0_81, %c0_82] : memref<3x128x128xbf16, #tpu.memory_space<vmem>>, vector<1x128x128xbf16>
    %132 = vector.shape_cast %131 : vector<1x128x128xbf16> to vector<128x128xbf16>
    %cst_83 = arith.constant dense<0.000000e+00> : vector<8x128xf32>
    %133 = tpu.matmul %123, %132, %cst_83 {dimension_numbers = #tpu.dot_dimension_numbers<[1], [0], [0], [1], [0, 0, 1, 1], [], []>} : vector<8x128xbf16>, vector<128x128xbf16>, vector<8x128xf32> -> vector<8x128xf32>
    %c1_84 = arith.constant 1 : index
    %c0_85 = arith.constant 0 : index
    %c0_86 = arith.constant 0 : index
    %134 = vector.load %arg3[%c1_84, %c0_85, %c0_86] : memref<3x1x128xf32, #tpu.memory_space<vmem>>, vector<1x1x128xf32>
    %135 = vector.shape_cast %134 : vector<1x1x128xf32> to vector<1x128xf32>
    %136 = vector.broadcast %135 : vector<1x128xf32> to vector<8x128xf32>
    %137 = arith.addf %133, %136 : vector<8x128xf32>
    %c2_87 = arith.constant 2 : index
    %c0_88 = arith.constant 0 : index
    %c0_89 = arith.constant 0 : index
    %138 = vector.load %arg2[%c2_87, %c0_88, %c0_89] : memref<3x128x128xbf16, #tpu.memory_space<vmem>>, vector<1x128x128xbf16>
    %139 = vector.shape_cast %138 : vector<1x128x128xbf16> to vector<128x128xbf16>
    %cst_90 = arith.constant dense<0.000000e+00> : vector<8x128xf32>
    %140 = tpu.matmul %123, %139, %cst_90 {dimension_numbers = #tpu.dot_dimension_numbers<[1], [0], [0], [1], [0, 0, 1, 1], [], []>} : vector<8x128xbf16>, vector<128x128xbf16>, vector<8x128xf32> -> vector<8x128xf32>
    %c2_91 = arith.constant 2 : index
    %c0_92 = arith.constant 0 : index
    %c0_93 = arith.constant 0 : index
    %141 = vector.load %arg3[%c2_91, %c0_92, %c0_93] : memref<3x1x128xf32, #tpu.memory_space<vmem>>, vector<1x1x128xf32>
    %142 = vector.shape_cast %141 : vector<1x1x128xf32> to vector<1x128xf32>
    %143 = vector.broadcast %142 : vector<1x128xf32> to vector<8x128xf32>
    %144 = arith.addf %140, %143 : vector<8x128xf32>
    %c0_94 = arith.constant 0 : index
    %145 = arith.index_cast %c2_i32 : i32 to index
    %c0_95 = arith.constant 0 : index
    %c0_96 = arith.constant 0 : index
    %146 = vector.load %arg1[%c0_94, %145, %c0_95, %c0_96] : memref<3x4x8x128xf32, #tpu.memory_space<vmem>>, vector<1x1x8x128xf32>
    %147 = vector.shape_cast %146 : vector<1x1x8x128xf32> to vector<8x128xf32>
    %148 = arith.addf %147, %130 : vector<8x128xf32>
    %149 = arith.negf %148 : vector<8x128xf32>
    %150 = math.exp %149 : vector<8x128xf32>
    %cst_97 = arith.constant 1.000000e+00 : f32
    %151 = vector.broadcast %cst_97 : f32 to vector<8x128xf32>
    %152 = arith.addf %151, %150 : vector<8x128xf32>
    %153 = arith.divf %151, %152 : vector<8x128xf32>
    %c1_98 = arith.constant 1 : index
    %154 = arith.index_cast %c2_i32 : i32 to index
    %c0_99 = arith.constant 0 : index
    %c0_100 = arith.constant 0 : index
    %155 = vector.load %arg1[%c1_98, %154, %c0_99, %c0_100] : memref<3x4x8x128xf32, #tpu.memory_space<vmem>>, vector<1x1x8x128xf32>
    %156 = vector.shape_cast %155 : vector<1x1x8x128xf32> to vector<8x128xf32>
    %157 = arith.addf %156, %137 : vector<8x128xf32>
    %158 = arith.negf %157 : vector<8x128xf32>
    %159 = math.exp %158 : vector<8x128xf32>
    %cst_101 = arith.constant 1.000000e+00 : f32
    %160 = vector.broadcast %cst_101 : f32 to vector<8x128xf32>
    %161 = arith.addf %160, %159 : vector<8x128xf32>
    %162 = arith.divf %160, %161 : vector<8x128xf32>
    %c2_102 = arith.constant 2 : index
    %163 = arith.index_cast %c2_i32 : i32 to index
    %c0_103 = arith.constant 0 : index
    %c0_104 = arith.constant 0 : index
    %164 = vector.load %arg1[%c2_102, %163, %c0_103, %c0_104] : memref<3x4x8x128xf32, #tpu.memory_space<vmem>>, vector<1x1x8x128xf32>
    %165 = vector.shape_cast %164 : vector<1x1x8x128xf32> to vector<8x128xf32>
    %166 = arith.mulf %153, %144 : vector<8x128xf32>
    %167 = arith.addf %165, %166 : vector<8x128xf32>
    %168 = math.tanh %167 : vector<8x128xf32>
    %cst_105 = arith.constant 1.000000e+00 : f32
    %169 = vector.broadcast %cst_105 : f32 to vector<8x128xf32>
    %170 = arith.subf %169, %162 : vector<8x128xf32>
    %171 = arith.mulf %170, %168 : vector<8x128xf32>
    %172 = arith.mulf %162, %118 : vector<8x128xf32>
    %173 = arith.addf %171, %172 : vector<8x128xf32>
    %c4_i32_106 = arith.constant 4 : i32
    %174 = arith.muli %arg0, %c4_i32_106 : i32
    %175 = arith.addi %174, %c2_i32 : i32
    %c8_i32_107 = arith.constant 8 : i32
    %176 = arith.cmpi slt, %175, %c8_i32_107 : i32
    %177 = arith.select %176, %173, %118 : vector<8x128xf32>
    %178 = arith.index_cast %c2_i32 : i32 to index
    %c0_108 = arith.constant 0 : index
    %c0_109 = arith.constant 0 : index
    %179 = vector.load %arg4[%178, %c0_108, %c0_109] : memref<4x8x128xf32, #tpu.memory_space<vmem>>, vector<1x8x128xf32>
    %180 = vector.shape_cast %179 : vector<1x8x128xf32> to vector<8x128xf32>
    %181 = vector.shape_cast %177 : vector<8x128xf32> to vector<1x8x128xf32>
    tpu.vector_store %arg4[%178, %c0_108, %c0_109], %181 {strides = array<i32>} : memref<4x8x128xf32, #tpu.memory_space<vmem>>, vector<1x8x128xf32>,
    %c3_i32 = arith.constant 3 : i32
    %182 = arith.truncf %177 : vector<8x128xf32> to vector<8x128xbf16>
    %c0_110 = arith.constant 0 : index
    %c0_111 = arith.constant 0 : index
    %c0_112 = arith.constant 0 : index
    %183 = vector.load %arg2[%c0_110, %c0_111, %c0_112] : memref<3x128x128xbf16, #tpu.memory_space<vmem>>, vector<1x128x128xbf16>
    %184 = vector.shape_cast %183 : vector<1x128x128xbf16> to vector<128x128xbf16>
    %cst_113 = arith.constant dense<0.000000e+00> : vector<8x128xf32>
    %185 = tpu.matmul %182, %184, %cst_113 {dimension_numbers = #tpu.dot_dimension_numbers<[1], [0], [0], [1], [0, 0, 1, 1], [], []>} : vector<8x128xbf16>, vector<128x128xbf16>, vector<8x128xf32> -> vector<8x128xf32>
    %c0_114 = arith.constant 0 : index
    %c0_115 = arith.constant 0 : index
    %c0_116 = arith.constant 0 : index
    %186 = vector.load %arg3[%c0_114, %c0_115, %c0_116] : memref<3x1x128xf32, #tpu.memory_space<vmem>>, vector<1x1x128xf32>
    %187 = vector.shape_cast %186 : vector<1x1x128xf32> to vector<1x128xf32>
    %188 = vector.broadcast %187 : vector<1x128xf32> to vector<8x128xf32>
    %189 = arith.addf %185, %188 : vector<8x128xf32>
    %c1_117 = arith.constant 1 : index
    %c0_118 = arith.constant 0 : index
    %c0_119 = arith.constant 0 : index
    %190 = vector.load %arg2[%c1_117, %c0_118, %c0_119] : memref<3x128x128xbf16, #tpu.memory_space<vmem>>, vector<1x128x128xbf16>
    %191 = vector.shape_cast %190 : vector<1x128x128xbf16> to vector<128x128xbf16>
    %cst_120 = arith.constant dense<0.000000e+00> : vector<8x128xf32>
    %192 = tpu.matmul %182, %191, %cst_120 {dimension_numbers = #tpu.dot_dimension_numbers<[1], [0], [0], [1], [0, 0, 1, 1], [], []>} : vector<8x128xbf16>, vector<128x128xbf16>, vector<8x128xf32> -> vector<8x128xf32>
    %c1_121 = arith.constant 1 : index
    %c0_122 = arith.constant 0 : index
    %c0_123 = arith.constant 0 : index
    %193 = vector.load %arg3[%c1_121, %c0_122, %c0_123] : memref<3x1x128xf32, #tpu.memory_space<vmem>>, vector<1x1x128xf32>
    %194 = vector.shape_cast %193 : vector<1x1x128xf32> to vector<1x128xf32>
    %195 = vector.broadcast %194 : vector<1x128xf32> to vector<8x128xf32>
    %196 = arith.addf %192, %195 : vector<8x128xf32>
    %c2_124 = arith.constant 2 : index
    %c0_125 = arith.constant 0 : index
    %c0_126 = arith.constant 0 : index
    %197 = vector.load %arg2[%c2_124, %c0_125, %c0_126] : memref<3x128x128xbf16, #tpu.memory_space<vmem>>, vector<1x128x128xbf16>
    %198 = vector.shape_cast %197 : vector<1x128x128xbf16> to vector<128x128xbf16>
    %cst_127 = arith.constant dense<0.000000e+00> : vector<8x128xf32>
    %199 = tpu.matmul %182, %198, %cst_127 {dimension_numbers = #tpu.dot_dimension_numbers<[1], [0], [0], [1], [0, 0, 1, 1], [], []>} : vector<8x128xbf16>, vector<128x128xbf16>, vector<8x128xf32> -> vector<8x128xf32>
    %c2_128 = arith.constant 2 : index
    %c0_129 = arith.constant 0 : index
    %c0_130 = arith.constant 0 : index
    %200 = vector.load %arg3[%c2_128, %c0_129, %c0_130] : memref<3x1x128xf32, #tpu.memory_space<vmem>>, vector<1x1x128xf32>
    %201 = vector.shape_cast %200 : vector<1x1x128xf32> to vector<1x128xf32>
    %202 = vector.broadcast %201 : vector<1x128xf32> to vector<8x128xf32>
    %203 = arith.addf %199, %202 : vector<8x128xf32>
    %c0_131 = arith.constant 0 : index
    %204 = arith.index_cast %c3_i32 : i32 to index
    %c0_132 = arith.constant 0 : index
    %c0_133 = arith.constant 0 : index
    %205 = vector.load %arg1[%c0_131, %204, %c0_132, %c0_133] : memref<3x4x8x128xf32, #tpu.memory_space<vmem>>, vector<1x1x8x128xf32>
    %206 = vector.shape_cast %205 : vector<1x1x8x128xf32> to vector<8x128xf32>
    %207 = arith.addf %206, %189 : vector<8x128xf32>
    %208 = arith.negf %207 : vector<8x128xf32>
    %209 = math.exp %208 : vector<8x128xf32>
    %cst_134 = arith.constant 1.000000e+00 : f32
    %210 = vector.broadcast %cst_134 : f32 to vector<8x128xf32>
    %211 = arith.addf %210, %209 : vector<8x128xf32>
    %212 = arith.divf %210, %211 : vector<8x128xf32>
    %c1_135 = arith.constant 1 : index
    %213 = arith.index_cast %c3_i32 : i32 to index
    %c0_136 = arith.constant 0 : index
    %c0_137 = arith.constant 0 : index
    %214 = vector.load %arg1[%c1_135, %213, %c0_136, %c0_137] : memref<3x4x8x128xf32, #tpu.memory_space<vmem>>, vector<1x1x8x128xf32>
    %215 = vector.shape_cast %214 : vector<1x1x8x128xf32> to vector<8x128xf32>
    %216 = arith.addf %215, %196 : vector<8x128xf32>
    %217 = arith.negf %216 : vector<8x128xf32>
    %218 = math.exp %217 : vector<8x128xf32>
    %cst_138 = arith.constant 1.000000e+00 : f32
    %219 = vector.broadcast %cst_138 : f32 to vector<8x128xf32>
    %220 = arith.addf %219, %218 : vector<8x128xf32>
    %221 = arith.divf %219, %220 : vector<8x128xf32>
    %c2_139 = arith.constant 2 : index
    %222 = arith.index_cast %c3_i32 : i32 to index
    %c0_140 = arith.constant 0 : index
    %c0_141 = arith.constant 0 : index
    %223 = vector.load %arg1[%c2_139, %222, %c0_140, %c0_141] : memref<3x4x8x128xf32, #tpu.memory_space<vmem>>, vector<1x1x8x128xf32>
    %224 = vector.shape_cast %223 : vector<1x1x8x128xf32> to vector<8x128xf32>
    %225 = arith.mulf %212, %203 : vector<8x128xf32>
    %226 = arith.addf %224, %225 : vector<8x128xf32>
    %227 = math.tanh %226 : vector<8x128xf32>
    %cst_142 = arith.constant 1.000000e+00 : f32
    %228 = vector.broadcast %cst_142 : f32 to vector<8x128xf32>
    %229 = arith.subf %228, %221 : vector<8x128xf32>
    %230 = arith.mulf %229, %227 : vector<8x128xf32>
    %231 = arith.mulf %221, %177 : vector<8x128xf32>
    %232 = arith.addf %230, %231 : vector<8x128xf32>
    %c4_i32_143 = arith.constant 4 : i32
    %233 = arith.muli %arg0, %c4_i32_143 : i32
    %234 = arith.addi %233, %c3_i32 : i32
    %c8_i32_144 = arith.constant 8 : i32
    %235 = arith.cmpi slt, %234, %c8_i32_144 : i32
    %236 = arith.select %235, %232, %177 : vector<8x128xf32>
    %237 = arith.index_cast %c3_i32 : i32 to index
    %c0_145 = arith.constant 0 : index
    %c0_146 = arith.constant 0 : index
    %238 = vector.load %arg4[%237, %c0_145, %c0_146] : memref<4x8x128xf32, #tpu.memory_space<vmem>>, vector<1x8x128xf32>
    %239 = vector.shape_cast %238 : vector<1x8x128xf32> to vector<8x128xf32>
    %240 = vector.shape_cast %236 : vector<8x128xf32> to vector<1x8x128xf32>
    tpu.vector_store %arg4[%237, %c0_145, %c0_146], %240 {strides = array<i32>} : memref<4x8x128xf32, #tpu.memory_space<vmem>>, vector<1x8x128xf32>,
    %c4_i32_147 = arith.constant 4 : i32
    %c0_148 = arith.constant 0 : index
    %c0_149 = arith.constant 0 : index
    %c0_150 = arith.constant 0 : index
    %241 = vector.load %arg5[%c0_148, %c0_149, %c0_150] : memref<1x8x128xf32, #tpu.memory_space<vmem>>, vector<1x8x128xf32>
    %242 = vector.shape_cast %241 : vector<1x8x128xf32> to vector<8x128xf32>
    %243 = vector.shape_cast %236 : vector<8x128xf32> to vector<1x8x128xf32>
    tpu.vector_store %arg5[%c0_148, %c0_149, %c0_150], %243 {strides = array<i32>} : memref<1x8x128xf32, #tpu.memory_space<vmem>>, vector<1x8x128xf32>,
    return
  }
  func.func @transform_0(%arg0: i32) -> (i32, i32, i32, i32) {
    %c0_i32 = arith.constant 0 : i32
    %c0_i32_0 = arith.constant 0 : i32
    %c0_i32_1 = arith.constant 0 : i32
    %c0_i32_2 = arith.constant 0 : i32
    return %c0_i32, %arg0, %c0_i32_0, %c0_i32_1 : i32, i32, i32, i32
  }
  func.func @transform_1(%arg0: i32) -> (i32, i32, i32) {
    %c0_i32 = arith.constant 0 : i32
    %c0_i32_0 = arith.constant 0 : i32
    %c0_i32_1 = arith.constant 0 : i32
    %c0_i32_2 = arith.constant 0 : i32
    return %c0_i32, %c0_i32_0, %c0_i32_1 : i32, i32, i32
  }
  func.func @transform_2(%arg0: i32) -> (i32, i32, i32) {
    %c0_i32 = arith.constant 0 : i32
    %c0_i32_0 = arith.constant 0 : i32
    %c0_i32_1 = arith.constant 0 : i32
    %c0_i32_2 = arith.constant 0 : i32
    return %c0_i32, %c0_i32_0, %c0_i32_1 : i32, i32, i32
  }
  func.func @transform_3(%arg0: i32) -> (i32, i32, i32) {
    %c0_i32 = arith.constant 0 : i32
    %c0_i32_0 = arith.constant 0 : i32
    %c0_i32_1 = arith.constant 0 : i32
    return %arg0, %c0_i32, %c0_i32_0 : i32, i32, i32
  }
  func.func @transform_4(%arg0: i32) -> (i32, i32, i32) {
    %c0_i32 = arith.constant 0 : i32
    %c0_i32_0 = arith.constant 0 : i32
    %c0_i32_1 = arith.constant 0 : i32
    %c0_i32_2 = arith.constant 0 : i32
    return %c0_i32, %c0_i32_0, %c0_i32_1 : i32, i32, i32
  }
}

</mosaic_0001>

<llo_original>
// kernel: encoder_forward.1
$region0: #{encoder_forward.1}
  #allocation0 [shape = 'u32[]', space=smem, size = 0x4, offset = 0x4, fixed_abs, tag = 'smem constant byte address 0x4 - core index']
  #allocation1 [shape = 'u32[144,128]{1,0:T(1,128)}', space=vmem, size = 0x12000, scoped, tag = 'internal scratch']
  %s0 = inlined_call_operand.vmem [shape: f32[3,8,8,128], index: 0, kind: input, shape index: {}]
  %s1 = inlined_call_operand.vmem [shape: bf16[3,128,128], index: 1, kind: input, shape index: {}]
  %s2 = inlined_call_operand.vmem [shape: f32[3,1,128], index: 2, kind: input, shape index: {}]
  %s3 = inlined_call_operand.vmem [shape: f32[8,8,128], index: 3, kind: output, shape index: {0}]
  %s4 = inlined_call_operand.vmem [shape: f32[1,8,128], index: 4, kind: output, shape index: {1}]
  %5 = xla_tuple %s3, %s4
  %s6 = sld [smem:[#allocation0]]
  $region95: #{encoder_forward.1} parent=0
    _
  %s8 = ssub.s32 1, %s6
  %s9 = scalar_select 0, %s8, %s6
  $region1: #{encoder_forward.1} parent=0
    #allocation2 [shape = 'u8[98304]{0}', space=vmem, size = 0x18000, scoped, tag = 'input window, operand 0']
    loop: start=0, step=1, limit=4
    $region2: #{encoder_forward.1} parent=1 // loop_pre_header
      _
    $region3: #{encoder_forward.1} parent=1 // loop_header
      %s11 = sphi 0, %s15
      %p12 = scmp.ge.s32.totalorder %s11, 4
      %s21 = sphi 0, %s23
      %s24 = sphi 0, %s21
      %s25 = sphi 0, %s24
      %s41 = sphi 0, %s25
      %s45 = sphi 0, %s45
      %s47 = sphi 0, %s45
      %s48 = sphi 0, %s47
      %s62 = sphi 0, %s48
      %s66 = sphi 0, %s66
      %s68 = sphi 0, %s66
      %s69 = sphi 0, %s68
      %s83 = sphi 0, %s69
      %s89 = sphi 0, %s91
      %s92 = sphi 0, %s89
      %s93 = sphi 0, %s92
      %s109 = sphi 0, %s93
      %s113 = sphi 0, %s113
      %s115 = sphi 0, %s113
      %s116 = sphi 0, %s115
      %s130 = sphi 0, %s116
    $region4: #{encoder_forward.1} parent=1 // loop_header_branch
      %14 = sbr.rel (%p12) target = $region8
    $region5: #{encoder_forward.1} parent=1 // loop_body
      %s16 = ssub.s32 %s11, 1
      %s17 = ssub.s32 %s11, 2
      %s18 = sadd.s32 %s11, 1
      %s19 = ssub.s32 %s11, %s18
      %p20 = scmp.eq.s32.totalorder %s19, 0
      %s22 = sadd.s32 %s21, 1
      %s23 = scalar_select %p20, %s21, %s22
      %p26 = pneg %p20
      %p27 = scmp.eq.s32.totalorder %s11, 1
      %p28 = por %p26, %p27
      %p29 = scmp.ne.s32.totalorder %s21, %s24
      %p30 = scmp.eq.s32.totalorder %s11, 0
      %p31 = por %p29, %p30
      %p32 = scmp.ne.s32.totalorder %s21, %s24
      %p33 = scmp.eq.s32.totalorder %s16, 1
      %p34 = por %p32, %p33
      %p35 = scmp.ne.s32.totalorder %s24, %s25
      %p36 = scmp.eq.s32.totalorder %s16, 0
      %p37 = por %p35, %p36
      %p38 = scmp.ne.s32.totalorder %s24, %s25
      %p39 = scmp.eq.s32.totalorder %s17, 1
      %p40 = por %p38, %p39
      %p42 = scmp.ne.s32.totalorder %s25, %s41
      %p43 = scmp.eq.s32.totalorder %s17, 0
      %p44 = por %p42, %p43
      %s46 = sadd.s32 %s45, 1
      %p49 = scmp.eq.s32.totalorder %s11, 1
      %p50 = scmp.ne.s32.totalorder %s45, %s47
      %p51 = scmp.eq.s32.totalorder %s11, 0
      %p52 = por %p50, %p51
      %p53 = scmp.ne.s32.totalorder %s45, %s47
      %p54 = scmp.eq.s32.totalorder %s16, 1
      %p55 = por %p53, %p54
      %p56 = scmp.ne.s32.totalorder %s47, %s48
      %p57 = scmp.eq.s32.totalorder %s16, 0
      %p58 = por %p56, %p57
      %p59 = scmp.ne.s32.totalorder %s47, %s48
      %p60 = scmp.eq.s32.totalorder %s17, 1
      %p61 = por %p59, %p60
      %p63 = scmp.ne.s32.totalorder %s48, %s62
      %p64 = scmp.eq.s32.totalorder %s17, 0
      %p65 = por %p63, %p64
      %s67 = sadd.s32 %s66, 1
      %p70 = scmp.eq.s32.totalorder %s11, 1
      %p71 = scmp.ne.s32.totalorder %s66, %s68
      %p72 = scmp.eq.s32.totalorder %s11, 0
      %p73 = por %p71, %p72
      %p74 = scmp.ne.s32.totalorder %s66, %s68
      %p75 = scmp.eq.s32.totalorder %s16, 1
      %p76 = por %p74, %p75
      %p77 = scmp.ne.s32.totalorder %s68, %s69
      %p78 = scmp.eq.s32.totalorder %s16, 0
      %p79 = por %p77, %p78
      %p80 = scmp.ne.s32.totalorder %s68, %s69
      %p81 = scmp.eq.s32.totalorder %s17, 1
      %p82 = por %p80, %p81
      %p84 = scmp.ne.s32.totalorder %s69, %s83
      %p85 = scmp.eq.s32.totalorder %s17, 0
      %p86 = por %p84, %p85
      %s87 = ssub.s32 %s11, %s18
      %p88 = scmp.eq.s32.totalorder %s87, 0
      %s90 = sadd.s32 %s89, 1
      %s91 = scalar_select %p88, %s89, %s90
      %p94 = pneg %p88
      %p95 = scmp.eq.s32.totalorder %s11, 1
      %p96 = por %p94, %p95
      %p97 = scmp.ne.s32.totalorder %s89, %s92
      %p98 = scmp.eq.s32.totalorder %s11, 0
      %p99 = por %p97, %p98
      %p100 = scmp.ne.s32.totalorder %s89, %s92
      %p101 = scmp.eq.s32.totalorder %s16, 1
      %p102 = por %p100, %p101
      %p103 = scmp.ne.s32.totalorder %s92, %s93
      %p104 = scmp.eq.s32.totalorder %s16, 0
      %p105 = por %p103, %p104
      %p106 = scmp.ne.s32.totalorder %s92, %s93
      %p107 = scmp.eq.s32.totalorder %s17, 1
      %p108 = por %p106, %p107
      %p110 = scmp.ne.s32.totalorder %s93, %s109
      %p111 = scmp.eq.s32.totalorder %s17, 0
      %p112 = por %p110, %p111
      %s114 = sadd.s32 %s113, 1
      %p117 = scmp.eq.s32.totalorder %s11, 1
      %p118 = scmp.ne.s32.totalorder %s113, %s115
      %p119 = scmp.eq.s32.totalorder %s11, 0
      %p120 = por %p118, %p119
      %p121 = scmp.ne.s32.totalorder %s113, %s115
      %p122 = scmp.eq.s32.totalorder %s16, 1
      %p123 = por %p121, %p122
      %p124 = scmp.ne.s32.totalorder %s115, %s116
      %p125 = scmp.eq.s32.totalorder %s16, 0
      %p126 = por %p124, %p125
      %p127 = scmp.ne.s32.totalorder %s115, %s116
      %p128 = scmp.eq.s32.totalorder %s17, 1
      %p129 = por %p127, %p128
      %p131 = scmp.ne.s32.totalorder %s116, %s130
      %p132 = scmp.eq.s32.totalorder %s17, 0
      %p133 = por %p131, %p132
      %p134 = scmp.le.s32.totalorder 1, %s11
      %p135 = scmp.lt.s32.totalorder %s11, 3
      %p136 = pnand %p134, %p135
      %p137 = pneg %p136
      // Predicated region
      $region9: #{encoder_forward.1} parent=5 // pred_check
        _
      $region10: #{encoder_forward.1} parent=5 // pred_check_branch
        %139 = sbr.rel (%p136) target = $region12
      $region11: #{encoder_forward.1} parent=5 // pred_region
        %s140 = ssub.s32 %s11, 1
        // Predicated region
        $region13: #{encoder_forward.1} parent=11 // pred_check
          %p141 = pneg %p58
        $region14: #{encoder_forward.1} parent=11 // pred_check_branch
          %143 = sbr.rel (%p141) target = $region16
        $region15: #{encoder_forward.1} parent=11 // pred_region
          _
        $region16: #{encoder_forward.1} parent=11 // pred_fallthru
          _
        // Predicated region
        $region17: #{encoder_forward.1} parent=11 // pred_check
          %p144 = pneg %p79
        $region18: #{encoder_forward.1} parent=11 // pred_check_branch
          %146 = sbr.rel (%p144) target = $region20
        $region19: #{encoder_forward.1} parent=11 // pred_region
          _
        $region20: #{encoder_forward.1} parent=11 // pred_fallthru
          _
      $region12: #{encoder_forward.1} parent=5 // pred_fallthru
        _
      %p147 = scmp.lt.s32.totalorder %s11, 2
      // Predicated region
      $region21: #{encoder_forward.1} parent=5 // pred_check
        %p148 = pneg %p147
      $region22: #{encoder_forward.1} parent=5 // pred_check_branch
        %150 = sbr.rel (%p148) target = $region24
      $region23: #{encoder_forward.1} parent=5 // pred_region
        // Predicated region
        $region25: #{encoder_forward.1} parent=23 // pred_check
          %p151 = pneg %p31
        $region26: #{encoder_forward.1} parent=23 // pred_check_branch
          %153 = sbr.rel (%p151) target = $region28
        $region27: #{encoder_forward.1} parent=23 // pred_region
          %s154 = sand.u32 %s21, 1
          %s155 = sand.u32 %s21, 1
          %s156 = smul.addr %s155, 96
          %s157 = scalar_lea.vmem [#allocation2], %s156
          %s158 = smul.u32 4, %s11
          %s159 = smul.addr %s158, 8
          %s160 = scalar_lea.vmem %s0, %s159
          // Predicated region
          $region29: #{encoder_forward.1} parent=27 // pred_check
            _
          $region30: #{encoder_forward.1} parent=27 // pred_check_branch
            %162 = sbr.rel (0) target = $region32
          $region31: #{encoder_forward.1} parent=27 // pred_region
            // Predicated region
            $region33: #{encoder_forward.1} parent=31 // pred_check
              _
            $region34: #{encoder_forward.1} parent=31 // pred_check_branch
              %164 = sbr.rel (0) target = $region36
            $region35: #{encoder_forward.1} parent=31 // pred_region
              // Predicated region
              $region48: #{encoder_forward.1} parent=35 // pred_check
                _
              $region49: #{encoder_forward.1} parent=35 // pred_check_branch
                %201 = sbr.rel (0) target = $region51
              $region50: #{encoder_forward.1} parent=35 // pred_region
                loop: start=0, step=1, limit=1
                $region52: #{encoder_forward.1} parent=50 // loop_pre_header
                  _
                $region53: #{encoder_forward.1} parent=50 // loop_header
                  %s203 = sphi 0, %s207
                  %p204 = scmp.ge.s32.totalorder %s203, 1
                  %s208 = sphi %s160, %s160
                  %s209 = sphi %s157, %s157
                $region54: #{encoder_forward.1} parent=50 // loop_header_branch
                  %206 = sbr.rel (%p204) target = $region58
                $region55: #{encoder_forward.1} parent=50 // loop_body
                  %v210 = vld [vmem:[%s208] sm:$0xff]
                  %211 = vst [vmem:[%s209] sm:$0xff] %v210
                  %v212 = vld [vmem:[%s208 + $0x8] sm:$0xff]
                  %213 = vst [vmem:[%s209 + $0x8] sm:$0xff] %v212
                  %v214 = vld [vmem:[%s208 + $0x10] sm:$0xff]
                  %215 = vst [vmem:[%s209 + $0x10] sm:$0xff] %v214
                  %v216 = vld [vmem:[%s208 + $0x18] sm:$0xff]
                  %217 = vst [vmem:[%s209 + $0x18] sm:$0xff] %v216
                  %v218 = vld [vmem:[%s208 + $0x40] sm:$0xff]
                  %219 = vst [vmem:[%s209 + $0x20] sm:$0xff] %v218
                  %v220 = vld [vmem:[%s208 + $0x48] sm:$0xff]
                  %221 = vst [vmem:[%s209 + $0x28] sm:$0xff] %v220
                  %v222 = vld [vmem:[%s208 + $0x50] sm:$0xff]
                  %223 = vst [vmem:[%s209 + $0x30] sm:$0xff] %v222
                  %v224 = vld [vmem:[%s208 + $0x58] sm:$0xff]
                  %225 = vst [vmem:[%s209 + $0x38] sm:$0xff] %v224
                  %v226 = vld [vmem:[%s208 + $0x80] sm:$0xff]
                  %227 = vst [vmem:[%s209 + $0x40] sm:$0xff] %v226
                  %v228 = vld [vmem:[%s208 + $0x88] sm:$0xff]
                  %229 = vst [vmem:[%s209 + $0x48] sm:$0xff] %v228
                  %v230 = vld [vmem:[%s208 + $0x90] sm:$0xff]
                  %231 = vst [vmem:[%s209 + $0x50] sm:$0xff] %v230
                  %v232 = vld [vmem:[%s208 + $0x98] sm:$0xff]
                  %233 = vst [vmem:[%s209 + $0x58] sm:$0xff] %v232
                $region56: #{encoder_forward.1} parent=50 // loop_footer
                  %s207 = sadd.s32 1, %s203
                $region57: #{encoder_forward.1} parent=50 // loop_footer_branch
                  %202 = sbr.rel target = $region53
                $region58: #{encoder_forward.1} parent=50 // loop_exit
                  _
              $region51: #{encoder_forward.1} parent=35 // pred_fallthru
                _
              // Predicated region
              $region59: #{encoder_forward.1} parent=35 // pred_check
                _
              $region60: #{encoder_forward.1} parent=35 // pred_check_branch
                %235 = sbr.rel target = $region62
              $region61: #{encoder_forward.1} parent=35 // pred_region
                _
              $region62: #{encoder_forward.1} parent=35 // pred_fallthru
                _
            $region36: #{encoder_forward.1} parent=31 // pred_fallthru
              _
            // Predicated region
            $region37: #{encoder_forward.1} parent=31 // pred_check
              _
            $region38: #{encoder_forward.1} parent=31 // pred_check_branch
              %166 = sbr.rel target = $region40
            $region39: #{encoder_forward.1} parent=31 // pred_region
              loop: start=0, step=1, limit=1
              $region41: #{encoder_forward.1} parent=39 // loop_pre_header
                _
              $region42: #{encoder_forward.1} parent=39 // loop_header
                %s169 = sphi 0, %s173
                %p170 = scmp.ge.s32.totalorder %s169, 1
                %s174 = sphi %s160, %s160
                %s175 = sphi %s157, %s157
              $region43: #{encoder_forward.1} parent=39 // loop_header_branch
                %172 = sbr.rel (%p170) target = $region47
              $region44: #{encoder_forward.1} parent=39 // loop_body
                %v176 = vld [vmem:[%s174] sm:$0xff]
                %177 = vst [vmem:[%s175] sm:$0xff] %v176
                %v178 = vld [vmem:[%s174 + $0x8] sm:$0xff]
                %179 = vst [vmem:[%s175 + $0x8] sm:$0xff] %v178
                %v180 = vld [vmem:[%s174 + $0x10] sm:$0xff]
                %181 = vst [vmem:[%s175 + $0x10] sm:$0xff] %v180
                %v182 = vld [vmem:[%s174 + $0x18] sm:$0xff]
                %183 = vst [vmem:[%s175 + $0x18] sm:$0xff] %v182
                %v184 = vld [vmem:[%s174 + $0x40] sm:$0xff]
                %185 = vst [vmem:[%s175 + $0x20] sm:$0xff] %v184
                %v186 = vld [vmem:[%s174 + $0x48] sm:$0xff]
                %187 = vst [vmem:[%s175 + $0x28] sm:$0xff] %v186
                %v188 = vld [vmem:[%s174 + $0x50] sm:$0xff]
                %189 = vst [vmem:[%s175 + $0x30] sm:$0xff] %v188
                %v190 = vld [vmem:[%s174 + $0x58] sm:$0xff]
                %191 = vst [vmem:[%s175 + $0x38] sm:$0xff] %v190
                %v192 = vld [vmem:[%s174 + $0x80] sm:$0xff]
                %193 = vst [vmem:[%s175 + $0x40] sm:$0xff] %v192
                %v194 = vld [vmem:[%s174 + $0x88] sm:$0xff]
                %195 = vst [vmem:[%s175 + $0x48] sm:$0xff] %v194
                %v196 = vld [vmem:[%s174 + $0x90] sm:$0xff]
                %197 = vst [vmem:[%s175 + $0x50] sm:$0xff] %v196
                %v198 = vld [vmem:[%s174 + $0x98] sm:$0xff]
                %199 = vst [vmem:[%s175 + $0x58] sm:$0xff] %v198
              $region45: #{encoder_forward.1} parent=39 // loop_footer
                %s173 = sadd.s32 1, %s169
              $region46: #{encoder_forward.1} parent=39 // loop_footer_branch
                %168 = sbr.rel target = $region42
              $region47: #{encoder_forward.1} parent=39 // loop_exit
                _
            $region40: #{encoder_forward.1} parent=31 // pred_fallthru
              _
          $region32: #{encoder_forward.1} parent=27 // pred_fallthru
            _
          %236 = vnop
        $region28: #{encoder_forward.1} parent=23 // pred_fallthru
          _
      $region24: #{encoder_forward.1} parent=5 // pred_fallthru
        _
      %p237 = scmp.le.s32.totalorder 1, %s11
      %p238 = scmp.lt.s32.totalorder %s11, 3
      %p239 = pnand %p237, %p238
      %p240 = pneg %p239
      // Predicated region
      $region63: #{encoder_forward.1} parent=5 // pred_check
        _
      $region64: #{encoder_forward.1} parent=5 // pred_check_branch
        %242 = sbr.rel (%p239) target = $region66
      $region65: #{encoder_forward.1} parent=5 // pred_region
        %s243 = ssub.s32 %s11, 1
        %s244 = sand.u32 %s24, 1
        %s245 = sand.u32 %s24, 1
        %s246 = smul.addr %s245, 96
        %s247 = scalar_lea.vmem [#allocation2], %s246
        // Predicated region
        $region67: #{encoder_forward.1} parent=65 // pred_check
          %p248 = pneg %p37
        $region68: #{encoder_forward.1} parent=65 // pred_check_branch
          %250 = sbr.rel (%p248) target = $region70
        $region69: #{encoder_forward.1} parent=65 // pred_region
          _
        $region70: #{encoder_forward.1} parent=65 // pred_fallthru
          _
        %s251 = sand.u32 %s24, 1
        %s252 = sand.u32 %s24, 1
        %s253 = smul.addr %s252, 96
        %s254 = scalar_lea.vmem [#allocation2], %s253
        %p255 = pneg %p37
        %p256 = pneg %p34
        %p257 = pneg %p58
        %p258 = pneg %p55
        %p259 = pneg %p79
        %p260 = pneg %p76
        %p261 = pneg %p105
        %p262 = pneg %p102
        %s263 = smul.u32 4, %s16
        %p264 = scmp.lt.s32.totalorder %s263, 7
        %s265 = scalar_select %p264, %s263, 7
        %s266 = smul.addr %s265, 8
        %s267 = scalar_lea.vmem %s3, %s266
        %p268 = pneg %p126
        %p269 = pneg %p123
        %s270 = smul.u32 4, %s16
        %s271 = smul.u32 4, %s16
        %p272 = scmp.lt.s32.totalorder %s271, 7
        %s273 = scalar_select %p272, %s271, 7
        %s274 = smul.addr %s273, 8
        %s275 = scalar_lea.vmem %s3, %s274
        %s276 = smul.u32 4, %s16
        %p278 = scmp.eq.s32.totalorder %s16, 0
        // Predicated region
        $region71: #{encoder_forward.1} parent=65 // pred_check
          %p279 = pneg %p278
        $region72: #{encoder_forward.1} parent=65 // pred_check_branch
          %281 = sbr.rel (%p279) target = $region74
        $region73: #{encoder_forward.1} parent=65 // pred_region
          %282 = vst [vmem:[%s4] sm:$0xff] 0.0
        $region74: #{encoder_forward.1} parent=65 // pred_fallthru
          _
        %v283 = vld [vmem:[%s4] sm:$0xff]
        %v284 = vpack.c.bf16 %v283, %v283
        %v285 = vld [vmem:[%s1] sm:$0xf]
        %v286 = vld [vmem:[%s1 + $0x4] sm:$0xf]
        %v287 = vld [vmem:[%s1 + $0x8] sm:$0xf]
        %v288 = vld [vmem:[%s1 + $0xc] sm:$0xf]
        %v289 = vld [vmem:[%s1 + $0x10] sm:$0xf]
        %v290 = vld [vmem:[%s1 + $0x14] sm:$0xf]
        %v291 = vld [vmem:[%s1 + $0x18] sm:$0xf]
        %v292 = vld [vmem:[%s1 + $0x1c] sm:$0xf]
        %v293 = vld [vmem:[%s1 + $0x20] sm:$0xf]
        %v294 = vld [vmem:[%s1 + $0x24] sm:$0xf]
        %v295 = vld [vmem:[%s1 + $0x28] sm:$0xf]
        %v296 = vld [vmem:[%s1 + $0x2c] sm:$0xf]
        %v297 = vld [vmem:[%s1 + $0x30] sm:$0xf]
        %v298 = vld [vmem:[%s1 + $0x34] sm:$0xf]
        %v299 = vld [vmem:[%s1 + $0x38] sm:$0xf]
        %v300 = vld [vmem:[%s1 + $0x3c] sm:$0xf]
        %v301 = vld [vmem:[%s2] sm:$0x1]
        %v303 = vlaneseq
        %v304 = vshrl.u32 %v303, 7
        %v305 = vsub.s32 0, %v304
        %v306 = vrot.slane %v301, %v305
        %v324 = vunpack.c.l.b16 %v285
        %v325 = vunpack.c.l.b16 %v286
        %v326 = vunpack.c.l.b16 %v287
        %v327 = vunpack.c.l.b16 %v288
        %v328 = vunpack.c.l.b16 %v289
        %v329 = vunpack.c.l.b16 %v290
        %v330 = vunpack.c.l.b16 %v291
        %v331 = vunpack.c.l.b16 %v292
        %v332 = vunpack.c.l.b16 %v293
        %v333 = vunpack.c.l.b16 %v294
        %v334 = vunpack.c.l.b16 %v295
        %v335 = vunpack.c.l.b16 %v296
        %v336 = vunpack.c.l.b16 %v297
        %v337 = vunpack.c.l.b16 %v298
        %v338 = vunpack.c.l.b16 %v299
        %v339 = vunpack.c.l.b16 %v300
        %v340 = vpack.c.b16 %v325, %v324
        %v341 = vpack.c.b16 %v327, %v326
        %v342 = vpack.c.b16 %v329, %v328
        %v343 = vpack.c.b16 %v331, %v330
        %v344 = vpack.c.b16 %v333, %v332
        %v345 = vpack.c.b16 %v335, %v334
        %v346 = vpack.c.b16 %v337, %v336
        %v347 = vpack.c.b16 %v339, %v338
        %356 = vmatprep.subr.bf16.mxu0 0
        %357 = vmatpush1.bf16.msra.mxu0 %v340
        %358 = vmatprep.subr.bf16.mxu0 0
        %359 = vmatpush1.bf16.msra.mxu0 %v341
        %360 = vmatprep.subr.bf16.mxu0 0
        %361 = vmatpush1.bf16.msra.mxu0 %v342
        %362 = vmatprep.subr.bf16.mxu0 0
        %363 = vmatpush1.bf16.msra.mxu0 %v343
        %364 = vmatprep.subr.bf16.mxu0 0
        %365 = vmatpush1.bf16.msra.mxu0 %v344
        %366 = vmatprep.subr.bf16.mxu0 0
        %367 = vmatpush1.bf16.msra.mxu0 %v345
        %368 = vmatprep.subr.bf16.mxu0 0
        %369 = vmatpush1.bf16.msra.mxu0 %v346
        %370 = vmatprep.subr.bf16.mxu0 0
        %371 = vmatpush1.bf16.msra.mxu0 %v347
        %372 = vmatprep.subr.bf16.mxu0 0
        %373 = vmatpush1.bf16.msra.mxu0 0
        %374 = vmatprep.subr.bf16.mxu0 0
        %375 = vmatpush1.bf16.msra.mxu0 0
        %376 = vmatprep.subr.bf16.mxu0 0
        %377 = vmatpush1.bf16.msra.mxu0 0
        %378 = vmatprep.subr.bf16.mxu0 0
        %379 = vmatpush1.bf16.msra.mxu0 0
        %380 = vmatprep.subr.bf16.mxu0 0
        %381 = vmatpush1.bf16.msra.mxu0 0
        %382 = vmatprep.subr.bf16.mxu0 0
        %383 = vmatpush1.bf16.msra.mxu0 0
        %384 = vmatprep.subr.bf16.mxu0 0
        %385 = vmatpush1.bf16.msra.mxu0 0
        %386 = vmatprep.subr.bf16.mxu0 0
        %387 = vmatpush1.bf16.msra.mxu0 0
        %388 = vmatprep.mubr.bf16.mxu0 0
        %389 = vmatmul.mubr.bf16.gmra.mrb[0].mxu0 %v284
        %v390 = vpop.f32.mrb[0].mxu0
        %v391 = vadd.f32 %v306, %v390
        %v392 = vpop.f32.mrb[0].mxu0
        %v393 = vpop.f32.mrb[0].mxu0
        %v394 = vpop.f32.mrb[0].mxu0
        %395 = vdwg.mxu0
        %s396 = scalar_lea.vmem %s1, 64
        %v397 = vld [vmem:[%s396] sm:$0xf]
        %v398 = vld [vmem:[%s396 + $0x4] sm:$0xf]
        %v399 = vld [vmem:[%s396 + $0x8] sm:$0xf]
        %v400 = vld [vmem:[%s396 + $0xc] sm:$0xf]
        %v401 = vld [vmem:[%s396 + $0x10] sm:$0xf]
        %v402 = vld [vmem:[%s396 + $0x14] sm:$0xf]
        %v403 = vld [vmem:[%s396 + $0x18] sm:$0xf]
        %v404 = vld [vmem:[%s396 + $0x1c] sm:$0xf]
        %v405 = vld [vmem:[%s396 + $0x20] sm:$0xf]
        %v406 = vld [vmem:[%s396 + $0x24] sm:$0xf]
        %v407 = vld [vmem:[%s396 + $0x28] sm:$0xf]
        %v408 = vld [vmem:[%s396 + $0x2c] sm:$0xf]
        %v409 = vld [vmem:[%s396 + $0x30] sm:$0xf]
        %v410 = vld [vmem:[%s396 + $0x34] sm:$0xf]
        %v411 = vld [vmem:[%s396 + $0x38] sm:$0xf]
        %v412 = vld [vmem:[%s396 + $0x3c] sm:$0xf]
        %s413 = scalar_lea.vmem %s2, 1
        %v414 = vld [vmem:[%s413] sm:$0x1]
        %v416 = vlaneseq
        %v417 = vshrl.u32 %v416, 7
        %v418 = vsub.s32 0, %v417
        %v419 = vrot.slane %v414, %v418
        %v437 = vunpack.c.l.b16 %v397
        %v438 = vunpack.c.l.b16 %v398
        %v439 = vunpack.c.l.b16 %v399
        %v440 = vunpack.c.l.b16 %v400
        %v441 = vunpack.c.l.b16 %v401
        %v442 = vunpack.c.l.b16 %v402
        %v443 = vunpack.c.l.b16 %v403
        %v444 = vunpack.c.l.b16 %v404
        %v445 = vunpack.c.l.b16 %v405
        %v446 = vunpack.c.l.b16 %v406
        %v447 = vunpack.c.l.b16 %v407
        %v448 = vunpack.c.l.b16 %v408
        %v449 = vunpack.c.l.b16 %v409
        %v450 = vunpack.c.l.b16 %v410
        %v451 = vunpack.c.l.b16 %v411
        %v452 = vunpack.c.l.b16 %v412
        %v453 = vpack.c.b16 %v438, %v437
        %v454 = vpack.c.b16 %v440, %v439
        %v455 = vpack.c.b16 %v442, %v441
        %v456 = vpack.c.b16 %v444, %v443
        %v457 = vpack.c.b16 %v446, %v445
        %v458 = vpack.c.b16 %v448, %v447
        %v459 = vpack.c.b16 %v450, %v449
        %v460 = vpack.c.b16 %v452, %v451
        %469 = vmatprep.subr.bf16.mxu0 0
        %470 = vmatpush1.bf16.msra.mxu0 %v453
        %471 = vmatprep.subr.bf16.mxu0 0
        %472 = vmatpush1.bf16.msra.mxu0 %v454
        %473 = vmatprep.subr.bf16.mxu0 0
        %474 = vmatpush1.bf16.msra.mxu0 %v455
        %475 = vmatprep.subr.bf16.mxu0 0
        %476 = vmatpush1.bf16.msra.mxu0 %v456
        %477 = vmatprep.subr.bf16.mxu0 0
        %478 = vmatpush1.bf16.msra.mxu0 %v457
        %479 = vmatprep.subr.bf16.mxu0 0
        %480 = vmatpush1.bf16.msra.mxu0 %v458
        %481 = vmatprep.subr.bf16.mxu0 0
        %482 = vmatpush1.bf16.msra.mxu0 %v459
        %483 = vmatprep.subr.bf16.mxu0 0
        %484 = vmatpush1.bf16.msra.mxu0 %v460
        %485 = vmatprep.subr.bf16.mxu0 0
        %486 = vmatpush1.bf16.msra.mxu0 0
        %487 = vmatprep.subr.bf16.mxu0 0
        %488 = vmatpush1.bf16.msra.mxu0 0
        %489 = vmatprep.subr.bf16.mxu0 0
        %490 = vmatpush1.bf16.msra.mxu0 0
        %491 = vmatprep.subr.bf16.mxu0 0
        %492 = vmatpush1.bf16.msra.mxu0 0
        %493 = vmatprep.subr.bf16.mxu0 0
        %494 = vmatpush1.bf16.msra.mxu0 0
        %495 = vmatprep.subr.bf16.mxu0 0
        %496 = vmatpush1.bf16.msra.mxu0 0
        %497 = vmatprep.subr.bf16.mxu0 0
        %498 = vmatpush1.bf16.msra.mxu0 0
        %499 = vmatprep.subr.bf16.mxu0 0
        %500 = vmatpush1.bf16.msra.mxu0 0
        %501 = vmatprep.mubr.bf16.mxu0 0
        %502 = vmatmul.mubr.bf16.gmra.mrb[0].mxu0 %v284
        %v503 = vpop.f32.mrb[0].mxu0
        %v504 = vadd.f32 %v419, %v503
        %v505 = vpop.f32.mrb[0].mxu0
        %v506 = vpop.f32.mrb[0].mxu0
        %v507 = vpop.f32.mrb[0].mxu0
        %508 = vdwg.mxu0
        %s509 = scalar_lea.vmem %s1, 128
        %v510 = vld [vmem:[%s509] sm:$0xf]
        %v511 = vld [vmem:[%s509 + $0x4] sm:$0xf]
        %v512 = vld [vmem:[%s509 + $0x8] sm:$0xf]
        %v513 = vld [vmem:[%s509 + $0xc] sm:$0xf]
        %v514 = vld [vmem:[%s509 + $0x10] sm:$0xf]
        %v515 = vld [vmem:[%s509 + $0x14] sm:$0xf]
        %v516 = vld [vmem:[%s509 + $0x18] sm:$0xf]
        %v517 = vld [vmem:[%s509 + $0x1c] sm:$0xf]
        %v518 = vld [vmem:[%s509 + $0x20] sm:$0xf]
        %v519 = vld [vmem:[%s509 + $0x24] sm:$0xf]
        %v520 = vld [vmem:[%s509 + $0x28] sm:$0xf]
        %v521 = vld [vmem:[%s509 + $0x2c] sm:$0xf]
        %v522 = vld [vmem:[%s509 + $0x30] sm:$0xf]
        %v523 = vld [vmem:[%s509 + $0x34] sm:$0xf]
        %v524 = vld [vmem:[%s509 + $0x38] sm:$0xf]
        %v525 = vld [vmem:[%s509 + $0x3c] sm:$0xf]
        %s526 = scalar_lea.vmem %s2, 2
        %v527 = vld [vmem:[%s526] sm:$0x1]
        %v529 = vlaneseq
        %v530 = vshrl.u32 %v529, 7
        %v531 = vsub.s32 0, %v530
        %v532 = vrot.slane %v527, %v531
        %v550 = vunpack.c.l.b16 %v510
        %v551 = vunpack.c.l.b16 %v511
        %v552 = vunpack.c.l.b16 %v512
        %v553 = vunpack.c.l.b16 %v513
        %v554 = vunpack.c.l.b16 %v514
        %v555 = vunpack.c.l.b16 %v515
        %v556 = vunpack.c.l.b16 %v516
        %v557 = vunpack.c.l.b16 %v517
        %v558 = vunpack.c.l.b16 %v518
        %v559 = vunpack.c.l.b16 %v519
        %v560 = vunpack.c.l.b16 %v520
        %v561 = vunpack.c.l.b16 %v521
        %v562 = vunpack.c.l.b16 %v522
        %v563 = vunpack.c.l.b16 %v523
        %v564 = vunpack.c.l.b16 %v524
        %v565 = vunpack.c.l.b16 %v525
        %v566 = vpack.c.b16 %v551, %v550
        %v567 = vpack.c.b16 %v553, %v552
        %v568 = vpack.c.b16 %v555, %v554
        %v569 = vpack.c.b16 %v557, %v556
        %v570 = vpack.c.b16 %v559, %v558
        %v571 = vpack.c.b16 %v561, %v560
        %v572 = vpack.c.b16 %v563, %v562
        %v573 = vpack.c.b16 %v565, %v564
        %582 = vmatprep.subr.bf16.mxu0 0
        %583 = vmatpush1.bf16.msra.mxu0 %v566
        %584 = vmatprep.subr.bf16.mxu0 0
        %585 = vmatpush1.bf16.msra.mxu0 %v567
        %586 = vmatprep.subr.bf16.mxu0 0
        %587 = vmatpush1.bf16.msra.mxu0 %v568
        %588 = vmatprep.subr.bf16.mxu0 0
        %589 = vmatpush1.bf16.msra.mxu0 %v569
        %590 = vmatprep.subr.bf16.mxu0 0
        %591 = vmatpush1.bf16.msra.mxu0 %v570
        %592 = vmatprep.subr.bf16.mxu0 0
        %593 = vmatpush1.bf16.msra.mxu0 %v571
        %594 = vmatprep.subr.bf16.mxu0 0
        %595 = vmatpush1.bf16.msra.mxu0 %v572
        %596 = vmatprep.subr.bf16.mxu0 0
        %597 = vmatpush1.bf16.msra.mxu0 %v573
        %598 = vmatprep.subr.bf16.mxu0 0
        %599 = vmatpush1.bf16.msra.mxu0 0
        %600 = vmatprep.subr.bf16.mxu0 0
        %601 = vmatpush1.bf16.msra.mxu0 0
        %602 = vmatprep.subr.bf16.mxu0 0
        %603 = vmatpush1.bf16.msra.mxu0 0
        %604 = vmatprep.subr.bf16.mxu0 0
        %605 = vmatpush1.bf16.msra.mxu0 0
        %606 = vmatprep.subr.bf16.mxu0 0
        %607 = vmatpush1.bf16.msra.mxu0 0
        %608 = vmatprep.subr.bf16.mxu0 0
        %609 = vmatpush1.bf16.msra.mxu0 0
        %610 = vmatprep.subr.bf16.mxu0 0
        %611 = vmatpush1.bf16.msra.mxu0 0
        %612 = vmatprep.subr.bf16.mxu0 0
        %613 = vmatpush1.bf16.msra.mxu0 0
        %614 = vmatprep.mubr.bf16.mxu0 0
        %615 = vmatmul.mubr.bf16.gmra.mrb[0].mxu0 %v284
        %v616 = vpop.f32.mrb[0].mxu0
        %v617 = vadd.f32 %v532, %v616
        %v618 = vpop.f32.mrb[0].mxu0
        %v619 = vpop.f32.mrb[0].mxu0
        %v620 = vpop.f32.mrb[0].mxu0
        %621 = vdwg.mxu0
        %v622 = vld [vmem:[%s247] sm:$0xff]
        %v623 = vadd.f32 %v622, %v391
        %v624 = vxor.u32 %v623, 2147483648
        %v625 = vmul.f32 %v624, 1.442695
        %v626 = vpow.pop %v625
        %v627 = vadd.f32 %v626, 1.0
        %v628 = vrcp.pop %v627
        %v629 = vmul.f32 1.0, %v628
        %s630 = scalar_lea.vmem %s247, 32 [#allocation2]
        %v631 = vld [vmem:[%s630] sm:$0xff]
        %v632 = vadd.f32 %v631, %v504
        %v633 = vxor.u32 %v632, 2147483648
        %v634 = vmul.f32 %v633, 1.442695
        %v635 = vpow.pop %v634
        %v636 = vadd.f32 %v635, 1.0
        %v637 = vrcp.pop %v636
        %v638 = vmul.f32 1.0, %v637
        %s639 = scalar_lea.vmem %s247, 64 [#allocation2]
        %v640 = vld [vmem:[%s639] sm:$0xff]
        %v641 = vmul.f32 %v629, %v617
        %v642 = vadd.f32 %v640, %v641
        %v643 = vtanh.pop %v642
        %v644 = vsub.f32 1.0, %v638
        %v645 = vmul.f32 %v644, %v643
        %v646 = vmul.f32 %v638, %v283
        %v647 = vadd.f32 %v645, %v646
        %s648 = smul.u32 %s16, 4
        %p649 = scmp.lt.s32.totalorder %s648, 8
        %s650 = scalar_select %p649, 1, 0
        %v651 = vstv %s650
        %vm652 = vcmp.eq.s32.totalorder %v651, 1
        %v653 = vsel %vm652, %v647, %v283
        %654 = vst [vmem:[%s275] sm:$0xff] %v653
        %v655 = vpack.c.bf16 %v653, %v653
        %v656 = vld [vmem:[%s1] sm:$0xf]
        %v657 = vld [vmem:[%s1 + $0x4] sm:$0xf]
        %v658 = vld [vmem:[%s1 + $0x8] sm:$0xf]
        %v659 = vld [vmem:[%s1 + $0xc] sm:$0xf]
        %v660 = vld [vmem:[%s1 + $0x10] sm:$0xf]
        %v661 = vld [vmem:[%s1 + $0x14] sm:$0xf]
        %v662 = vld [vmem:[%s1 + $0x18] sm:$0xf]
        %v663 = vld [vmem:[%s1 + $0x1c] sm:$0xf]
        %v664 = vld [vmem:[%s1 + $0x20] sm:$0xf]
        %v665 = vld [vmem:[%s1 + $0x24] sm:$0xf]
        %v666 = vld [vmem:[%s1 + $0x28] sm:$0xf]
        %v667 = vld [vmem:[%s1 + $0x2c] sm:$0xf]
        %v668 = vld [vmem:[%s1 + $0x30] sm:$0xf]
        %v669 = vld [vmem:[%s1 + $0x34] sm:$0xf]
        %v670 = vld [vmem:[%s1 + $0x38] sm:$0xf]
        %v671 = vld [vmem:[%s1 + $0x3c] sm:$0xf]
        %v672 = vld [vmem:[%s2] sm:$0x1]
        %v674 = vlaneseq
        %v675 = vshrl.u32 %v674, 7
        %v676 = vsub.s32 0, %v675
        %v677 = vrot.slane %v672, %v676
        %v695 = vunpack.c.l.b16 %v656
        %v696 = vunpack.c.l.b16 %v657
        %v697 = vunpack.c.l.b16 %v658
        %v698 = vunpack.c.l.b16 %v659
        %v699 = vunpack.c.l.b16 %v660
        %v700 = vunpack.c.l.b16 %v661
        %v701 = vunpack.c.l.b16 %v662
        %v702 = vunpack.c.l.b16 %v663
        %v703 = vunpack.c.l.b16 %v664
        %v704 = vunpack.c.l.b16 %v665
        %v705 = vunpack.c.l.b16 %v666
        %v706 = vunpack.c.l.b16 %v667
        %v707 = vunpack.c.l.b16 %v668
        %v708 = vunpack.c.l.b16 %v669
        %v709 = vunpack.c.l.b16 %v670
        %v710 = vunpack.c.l.b16 %v671
        %v711 = vpack.c.b16 %v696, %v695
        %v712 = vpack.c.b16 %v698, %v697
        %v713 = vpack.c.b16 %v700, %v699
        %v714 = vpack.c.b16 %v702, %v701
        %v715 = vpack.c.b16 %v704, %v703
        %v716 = vpack.c.b16 %v706, %v705
        %v717 = vpack.c.b16 %v708, %v707
        %v718 = vpack.c.b16 %v710, %v709
        %727 = vmatprep.subr.bf16.mxu0 0
        %728 = vmatpush1.bf16.msra.mxu0 %v711
        %729 = vmatprep.subr.bf16.mxu0 0
        %730 = vmatpush1.bf16.msra.mxu0 %v712
        %731 = vmatprep.subr.bf16.mxu0 0
        %732 = vmatpush1.bf16.msra.mxu0 %v713
        %733 = vmatprep.subr.bf16.mxu0 0
        %734 = vmatpush1.bf16.msra.mxu0 %v714
        %735 = vmatprep.subr.bf16.mxu0 0
        %736 = vmatpush1.bf16.msra.mxu0 %v715
        %737 = vmatprep.subr.bf16.mxu0 0
        %738 = vmatpush1.bf16.msra.mxu0 %v716
        %739 = vmatprep.subr.bf16.mxu0 0
        %740 = vmatpush1.bf16.msra.mxu0 %v717
        %741 = vmatprep.subr.bf16.mxu0 0
        %742 = vmatpush1.bf16.msra.mxu0 %v718
        %743 = vmatprep.subr.bf16.mxu0 0
        %744 = vmatpush1.bf16.msra.mxu0 0
        %745 = vmatprep.subr.bf16.mxu0 0
        %746 = vmatpush1.bf16.msra.mxu0 0
        %747 = vmatprep.subr.bf16.mxu0 0
        %748 = vmatpush1.bf16.msra.mxu0 0
        %749 = vmatprep.subr.bf16.mxu0 0
        %750 = vmatpush1.bf16.msra.mxu0 0
        %751 = vmatprep.subr.bf16.mxu0 0
        %752 = vmatpush1.bf16.msra.mxu0 0
        %753 = vmatprep.subr.bf16.mxu0 0
        %754 = vmatpush1.bf16.msra.mxu0 0
        %755 = vmatprep.subr.bf16.mxu0 0
        %756 = vmatpush1.bf16.msra.mxu0 0
        %757 = vmatprep.subr.bf16.mxu0 0
        %758 = vmatpush1.bf16.msra.mxu0 0
        %759 = vmatprep.mubr.bf16.mxu0 0
        %760 = vmatmul.mubr.bf16.gmra.mrb[0].mxu0 %v655
        %v761 = vpop.f32.mrb[0].mxu0
        %v762 = vadd.f32 %v677, %v761
        %v763 = vpop.f32.mrb[0].mxu0
        %v764 = vpop.f32.mrb[0].mxu0
        %v765 = vpop.f32.mrb[0].mxu0
        %766 = vdwg.mxu0
        %v767 = vld [vmem:[%s396] sm:$0xf]
        %v768 = vld [vmem:[%s396 + $0x4] sm:$0xf]
        %v769 = vld [vmem:[%s396 + $0x8] sm:$0xf]
        %v770 = vld [vmem:[%s396 + $0xc] sm:$0xf]
        %v771 = vld [vmem:[%s396 + $0x10] sm:$0xf]
        %v772 = vld [vmem:[%s396 + $0x14] sm:$0xf]
        %v773 = vld [vmem:[%s396 + $0x18] sm:$0xf]
        %v774 = vld [vmem:[%s396 + $0x1c] sm:$0xf]
        %v775 = vld [vmem:[%s396 + $0x20] sm:$0xf]
        %v776 = vld [vmem:[%s396 + $0x24] sm:$0xf]
        %v777 = vld [vmem:[%s396 + $0x28] sm:$0xf]
        %v778 = vld [vmem:[%s396 + $0x2c] sm:$0xf]
        %v779 = vld [vmem:[%s396 + $0x30] sm:$0xf]
        %v780 = vld [vmem:[%s396 + $0x34] sm:$0xf]
        %v781 = vld [vmem:[%s396 + $0x38] sm:$0xf]
        %v782 = vld [vmem:[%s396 + $0x3c] sm:$0xf]
        %v783 = vld [vmem:[%s413] sm:$0x1]
        %v785 = vlaneseq
        %v786 = vshrl.u32 %v785, 7
        %v787 = vsub.s32 0, %v786
        %v788 = vrot.slane %v783, %v787
        %v806 = vunpack.c.l.b16 %v767
        %v807 = vunpack.c.l.b16 %v768
        %v808 = vunpack.c.l.b16 %v769
        %v809 = vunpack.c.l.b16 %v770
        %v810 = vunpack.c.l.b16 %v771
        %v811 = vunpack.c.l.b16 %v772
        %v812 = vunpack.c.l.b16 %v773
        %v813 = vunpack.c.l.b16 %v774
        %v814 = vunpack.c.l.b16 %v775
        %v815 = vunpack.c.l.b16 %v776
        %v816 = vunpack.c.l.b16 %v777
        %v817 = vunpack.c.l.b16 %v778
        %v818 = vunpack.c.l.b16 %v779
        %v819 = vunpack.c.l.b16 %v780
        %v820 = vunpack.c.l.b16 %v781
        %v821 = vunpack.c.l.b16 %v782
        %v822 = vpack.c.b16 %v807, %v806
        %v823 = vpack.c.b16 %v809, %v808
        %v824 = vpack.c.b16 %v811, %v810
        %v825 = vpack.c.b16 %v813, %v812
        %v826 = vpack.c.b16 %v815, %v814
        %v827 = vpack.c.b16 %v817, %v816
        %v828 = vpack.c.b16 %v819, %v818
        %v829 = vpack.c.b16 %v821, %v820
        %838 = vmatprep.subr.bf16.mxu0 0
        %839 = vmatpush1.bf16.msra.mxu0 %v822
        %840 = vmatprep.subr.bf16.mxu0 0
        %841 = vmatpush1.bf16.msra.mxu0 %v823
        %842 = vmatprep.subr.bf16.mxu0 0
        %843 = vmatpush1.bf16.msra.mxu0 %v824
        %844 = vmatprep.subr.bf16.mxu0 0
        %845 = vmatpush1.bf16.msra.mxu0 %v825
        %846 = vmatprep.subr.bf16.mxu0 0
        %847 = vmatpush1.bf16.msra.mxu0 %v826
        %848 = vmatprep.subr.bf16.mxu0 0
        %849 = vmatpush1.bf16.msra.mxu0 %v827
        %850 = vmatprep.subr.bf16.mxu0 0
        %851 = vmatpush1.bf16.msra.mxu0 %v828
        %852 = vmatprep.subr.bf16.mxu0 0
        %853 = vmatpush1.bf16.msra.mxu0 %v829
        %854 = vmatprep.subr.bf16.mxu0 0
        %855 = vmatpush1.bf16.msra.mxu0 0
        %856 = vmatprep.subr.bf16.mxu0 0
        %857 = vmatpush1.bf16.msra.mxu0 0
        %858 = vmatprep.subr.bf16.mxu0 0
        %859 = vmatpush1.bf16.msra.mxu0 0
        %860 = vmatprep.subr.bf16.mxu0 0
        %861 = vmatpush1.bf16.msra.mxu0 0
        %862 = vmatprep.subr.bf16.mxu0 0
        %863 = vmatpush1.bf16.msra.mxu0 0
        %864 = vmatprep.subr.bf16.mxu0 0
        %865 = vmatpush1.bf16.msra.mxu0 0
        %866 = vmatprep.subr.bf16.mxu0 0
        %867 = vmatpush1.bf16.msra.mxu0 0
        %868 = vmatprep.subr.bf16.mxu0 0
        %869 = vmatpush1.bf16.msra.mxu0 0
        %870 = vmatprep.mubr.bf16.mxu0 0
        %871 = vmatmul.mubr.bf16.gmra.mrb[0].mxu0 %v655
        %v872 = vpop.f32.mrb[0].mxu0
        %v873 = vadd.f32 %v788, %v872
        %v874 = vpop.f32.mrb[0].mxu0
        %v875 = vpop.f32.mrb[0].mxu0
        %v876 = vpop.f32.mrb[0].mxu0
        %877 = vdwg.mxu0
        %v878 = vld [vmem:[%s509] sm:$0xf]
        %v879 = vld [vmem:[%s509 + $0x4] sm:$0xf]
        %v880 = vld [vmem:[%s509 + $0x8] sm:$0xf]
        %v881 = vld [vmem:[%s509 + $0xc] sm:$0xf]
        %v882 = vld [vmem:[%s509 + $0x10] sm:$0xf]
        %v883 = vld [vmem:[%s509 + $0x14] sm:$0xf]
        %v884 = vld [vmem:[%s509 + $0x18] sm:$0xf]
        %v885 = vld [vmem:[%s509 + $0x1c] sm:$0xf]
        %v886 = vld [vmem:[%s509 + $0x20] sm:$0xf]
        %v887 = vld [vmem:[%s509 + $0x24] sm:$0xf]
        %v888 = vld [vmem:[%s509 + $0x28] sm:$0xf]
        %v889 = vld [vmem:[%s509 + $0x2c] sm:$0xf]
        %v890 = vld [vmem:[%s509 + $0x30] sm:$0xf]
        %v891 = vld [vmem:[%s509 + $0x34] sm:$0xf]
        %v892 = vld [vmem:[%s509 + $0x38] sm:$0xf]
        %v893 = vld [vmem:[%s509 + $0x3c] sm:$0xf]
        %v894 = vld [vmem:[%s526] sm:$0x1]
        %v896 = vlaneseq
        %v897 = vshrl.u32 %v896, 7
        %v898 = vsub.s32 0, %v897
        %v899 = vrot.slane %v894, %v898
        %v917 = vunpack.c.l.b16 %v878
        %v918 = vunpack.c.l.b16 %v879
        %v919 = vunpack.c.l.b16 %v880
        %v920 = vunpack.c.l.b16 %v881
        %v921 = vunpack.c.l.b16 %v882
        %v922 = vunpack.c.l.b16 %v883
        %v923 = vunpack.c.l.b16 %v884
        %v924 = vunpack.c.l.b16 %v885
        %v925 = vunpack.c.l.b16 %v886
        %v926 = vunpack.c.l.b16 %v887
        %v927 = vunpack.c.l.b16 %v888
        %v928 = vunpack.c.l.b16 %v889
        %v929 = vunpack.c.l.b16 %v890
        %v930 = vunpack.c.l.b16 %v891
        %v931 = vunpack.c.l.b16 %v892
        %v932 = vunpack.c.l.b16 %v893
        %v933 = vpack.c.b16 %v918, %v917
        %v934 = vpack.c.b16 %v920, %v919
        %v935 = vpack.c.b16 %v922, %v921
        %v936 = vpack.c.b16 %v924, %v923
        %v937 = vpack.c.b16 %v926, %v925
        %v938 = vpack.c.b16 %v928, %v927
        %v939 = vpack.c.b16 %v930, %v929
        %v940 = vpack.c.b16 %v932, %v931
        %949 = vmatprep.subr.bf16.mxu0 0
        %950 = vmatpush1.bf16.msra.mxu0 %v933
        %951 = vmatprep.subr.bf16.mxu0 0
        %952 = vmatpush1.bf16.msra.mxu0 %v934
        %953 = vmatprep.subr.bf16.mxu0 0
        %954 = vmatpush1.bf16.msra.mxu0 %v935
        %955 = vmatprep.subr.bf16.mxu0 0
        %956 = vmatpush1.bf16.msra.mxu0 %v936
        %957 = vmatprep.subr.bf16.mxu0 0
        %958 = vmatpush1.bf16.msra.mxu0 %v937
        %959 = vmatprep.subr.bf16.mxu0 0
        %960 = vmatpush1.bf16.msra.mxu0 %v938
        %961 = vmatprep.subr.bf16.mxu0 0
        %962 = vmatpush1.bf16.msra.mxu0 %v939
        %963 = vmatprep.subr.bf16.mxu0 0
        %964 = vmatpush1.bf16.msra.mxu0 %v940
        %965 = vmatprep.subr.bf16.mxu0 0
        %966 = vmatpush1.bf16.msra.mxu0 0
        %967 = vmatprep.subr.bf16.mxu0 0
        %968 = vmatpush1.bf16.msra.mxu0 0
        %969 = vmatprep.subr.bf16.mxu0 0
        %970 = vmatpush1.bf16.msra.mxu0 0
        %971 = vmatprep.subr.bf16.mxu0 0
        %972 = vmatpush1.bf16.msra.mxu0 0
        %973 = vmatprep.subr.bf16.mxu0 0
        %974 = vmatpush1.bf16.msra.mxu0 0
        %975 = vmatprep.subr.bf16.mxu0 0
        %976 = vmatpush1.bf16.msra.mxu0 0
        %977 = vmatprep.subr.bf16.mxu0 0
        %978 = vmatpush1.bf16.msra.mxu0 0
        %979 = vmatprep.subr.bf16.mxu0 0
        %980 = vmatpush1.bf16.msra.mxu0 0
        %981 = vmatprep.mubr.bf16.mxu0 0
        %982 = vmatmul.mubr.bf16.gmra.mrb[0].mxu0 %v655
        %v983 = vpop.f32.mrb[0].mxu0
        %v984 = vadd.f32 %v899, %v983
        %v985 = vpop.f32.mrb[0].mxu0
        %v986 = vpop.f32.mrb[0].mxu0
        %v987 = vpop.f32.mrb[0].mxu0
        %988 = vdwg.mxu0
        %s989 = scalar_lea.vmem %s247, 8 [#allocation2]
        %v990 = vld [vmem:[%s989] sm:$0xff]
        %v991 = vadd.f32 %v990, %v762
        %v992 = vxor.u32 %v991, 2147483648
        %v993 = vmul.f32 %v992, 1.442695
        %v994 = vpow.pop %v993
        %v995 = vadd.f32 %v994, 1.0
        %v996 = vrcp.pop %v995
        %v997 = vmul.f32 1.0, %v996
        %s998 = scalar_lea.vmem %s247, 40 [#allocation2]
        %v999 = vld [vmem:[%s998] sm:$0xff]
        %v1000 = vadd.f32 %v999, %v873
        %v1001 = vxor.u32 %v1000, 2147483648
        %v1002 = vmul.f32 %v1001, 1.442695
        %v1003 = vpow.pop %v1002
        %v1004 = vadd.f32 %v1003, 1.0
        %v1005 = vrcp.pop %v1004
        %v1006 = vmul.f32 1.0, %v1005
        %s1007 = scalar_lea.vmem %s247, 72 [#allocation2]
        %v1008 = vld [vmem:[%s1007] sm:$0xff]
        %v1009 = vmul.f32 %v997, %v984
        %v1010 = vadd.f32 %v1008, %v1009
        %v1011 = vtanh.pop %v1010
        %v1012 = vsub.f32 1.0, %v1006
        %v1013 = vmul.f32 %v1012, %v1011
        %v1014 = vmul.f32 %v1006, %v653
        %v1015 = vadd.f32 %v1013, %v1014
        %s1016 = sadd.s32 %s648, 1
        %p1017 = scmp.lt.s32.totalorder %s1016, 8
        %s1018 = scalar_select %p1017, 1, 0
        %v1019 = vstv %s1018
        %vm1020 = vcmp.eq.s32.totalorder %v1019, 1
        %v1021 = vsel %vm1020, %v1015, %v653
        %s1022 = scalar_lea.vmem %s275, 8
        %1023 = vst [vmem:[%s1022] sm:$0xff] %v1021
        %v1024 = vpack.c.bf16 %v1021, %v1021
        %v1025 = vld [vmem:[%s1] sm:$0xf]
        %v1026 = vld [vmem:[%s1 + $0x4] sm:$0xf]
        %v1027 = vld [vmem:[%s1 + $0x8] sm:$0xf]
        %v1028 = vld [vmem:[%s1 + $0xc] sm:$0xf]
        %v1029 = vld [vmem:[%s1 + $0x10] sm:$0xf]
        %v1030 = vld [vmem:[%s1 + $0x14] sm:$0xf]
        %v1031 = vld [vmem:[%s1 + $0x18] sm:$0xf]
        %v1032 = vld [vmem:[%s1 + $0x1c] sm:$0xf]
        %v1033 = vld [vmem:[%s1 + $0x20] sm:$0xf]
        %v1034 = vld [vmem:[%s1 + $0x24] sm:$0xf]
        %v1035 = vld [vmem:[%s1 + $0x28] sm:$0xf]
        %v1036 = vld [vmem:[%s1 + $0x2c] sm:$0xf]
        %v1037 = vld [vmem:[%s1 + $0x30] sm:$0xf]
        %v1038 = vld [vmem:[%s1 + $0x34] sm:$0xf]
        %v1039 = vld [vmem:[%s1 + $0x38] sm:$0xf]
        %v1040 = vld [vmem:[%s1 + $0x3c] sm:$0xf]
        %v1041 = vld [vmem:[%s2] sm:$0x1]
        %v1043 = vlaneseq
        %v1044 = vshrl.u32 %v1043, 7
        %v1045 = vsub.s32 0, %v1044
        %v1046 = vrot.slane %v1041, %v1045
        %v1064 = vunpack.c.l.b16 %v1025
        %v1065 = vunpack.c.l.b16 %v1026
        %v1066 = vunpack.c.l.b16 %v1027
        %v1067 = vunpack.c.l.b16 %v1028
        %v1068 = vunpack.c.l.b16 %v1029
        %v1069 = vunpack.c.l.b16 %v1030
        %v1070 = vunpack.c.l.b16 %v1031
        %v1071 = vunpack.c.l.b16 %v1032
        %v1072 = vunpack.c.l.b16 %v1033
        %v1073 = vunpack.c.l.b16 %v1034
        %v1074 = vunpack.c.l.b16 %v1035
        %v1075 = vunpack.c.l.b16 %v1036
        %v1076 = vunpack.c.l.b16 %v1037
        %v1077 = vunpack.c.l.b16 %v1038
        %v1078 = vunpack.c.l.b16 %v1039
        %v1079 = vunpack.c.l.b16 %v1040
        %v1080 = vpack.c.b16 %v1065, %v1064
        %v1081 = vpack.c.b16 %v1067, %v1066
        %v1082 = vpack.c.b16 %v1069, %v1068
        %v1083 = vpack.c.b16 %v1071, %v1070
        %v1084 = vpack.c.b16 %v1073, %v1072
        %v1085 = vpack.c.b16 %v1075, %v1074
        %v1086 = vpack.c.b16 %v1077, %v1076
        %v1087 = vpack.c.b16 %v1079, %v1078
        %1096 = vmatprep.subr.bf16.mxu0 0
        %1097 = vmatpush1.bf16.msra.mxu0 %v1080
        %1098 = vmatprep.subr.bf16.mxu0 0
        %1099 = vmatpush1.bf16.msra.mxu0 %v1081
        %1100 = vmatprep.subr.bf16.mxu0 0
        %1101 = vmatpush1.bf16.msra.mxu0 %v1082
        %1102 = vmatprep.subr.bf16.mxu0 0
        %1103 = vmatpush1.bf16.msra.mxu0 %v1083
        %1104 = vmatprep.subr.bf16.mxu0 0
        %1105 = vmatpush1.bf16.msra.mxu0 %v1084
        %1106 = vmatprep.subr.bf16.mxu0 0
        %1107 = vmatpush1.bf16.msra.mxu0 %v1085
        %1108 = vmatprep.subr.bf16.mxu0 0
        %1109 = vmatpush1.bf16.msra.mxu0 %v1086
        %1110 = vmatprep.subr.bf16.mxu0 0
        %1111 = vmatpush1.bf16.msra.mxu0 %v1087
        %1112 = vmatprep.subr.bf16.mxu0 0
        %1113 = vmatpush1.bf16.msra.mxu0 0
        %1114 = vmatprep.subr.bf16.mxu0 0
        %1115 = vmatpush1.bf16.msra.mxu0 0
        %1116 = vmatprep.subr.bf16.mxu0 0
        %1117 = vmatpush1.bf16.msra.mxu0 0
        %1118 = vmatprep.subr.bf16.mxu0 0
        %1119 = vmatpush1.bf16.msra.mxu0 0
        %1120 = vmatprep.subr.bf16.mxu0 0
        %1121 = vmatpush1.bf16.msra.mxu0 0
        %1122 = vmatprep.subr.bf16.mxu0 0
        %1123 = vmatpush1.bf16.msra.mxu0 0
        %1124 = vmatprep.subr.bf16.mxu0 0
        %1125 = vmatpush1.bf16.msra.mxu0 0
        %1126 = vmatprep.subr.bf16.mxu0 0
        %1127 = vmatpush1.bf16.msra.mxu0 0
        %1128 = vmatprep.mubr.bf16.mxu0 0
        %1129 = vmatmul.mubr.bf16.gmra.mrb[0].mxu0 %v1024
        %v1130 = vpop.f32.mrb[0].mxu0
        %v1131 = vadd.f32 %v1046, %v1130
        %v1132 = vpop.f32.mrb[0].mxu0
        %v1133 = vpop.f32.mrb[0].mxu0
        %v1134 = vpop.f32.mrb[0].mxu0
        %1135 = vdwg.mxu0
        %v1136 = vld [vmem:[%s396] sm:$0xf]
        %v1137 = vld [vmem:[%s396 + $0x4] sm:$0xf]
        %v1138 = vld [vmem:[%s396 + $0x8] sm:$0xf]
        %v1139 = vld [vmem:[%s396 + $0xc] sm:$0xf]
        %v1140 = vld [vmem:[%s396 + $0x10] sm:$0xf]
        %v1141 = vld [vmem:[%s396 + $0x14] sm:$0xf]
        %v1142 = vld [vmem:[%s396 + $0x18] sm:$0xf]
        %v1143 = vld [vmem:[%s396 + $0x1c] sm:$0xf]
        %v1144 = vld [vmem:[%s396 + $0x20] sm:$0xf]
        %v1145 = vld [vmem:[%s396 + $0x24] sm:$0xf]
        %v1146 = vld [vmem:[%s396 + $0x28] sm:$0xf]
        %v1147 = vld [vmem:[%s396 + $0x2c] sm:$0xf]
        %v1148 = vld [vmem:[%s396 + $0x30] sm:$0xf]
        %v1149 = vld [vmem:[%s396 + $0x34] sm:$0xf]
        %v1150 = vld [vmem:[%s396 + $0x38] sm:$0xf]
        %v1151 = vld [vmem:[%s396 + $0x3c] sm:$0xf]
        %v1152 = vld [vmem:[%s413] sm:$0x1]
        %v1154 = vlaneseq
        %v1155 = vshrl.u32 %v1154, 7
        %v1156 = vsub.s32 0, %v1155
        %v1157 = vrot.slane %v1152, %v1156
        %v1175 = vunpack.c.l.b16 %v1136
        %v1176 = vunpack.c.l.b16 %v1137
        %v1177 = vunpack.c.l.b16 %v1138
        %v1178 = vunpack.c.l.b16 %v1139
        %v1179 = vunpack.c.l.b16 %v1140
        %v1180 = vunpack.c.l.b16 %v1141
        %v1181 = vunpack.c.l.b16 %v1142
        %v1182 = vunpack.c.l.b16 %v1143
        %v1183 = vunpack.c.l.b16 %v1144
        %v1184 = vunpack.c.l.b16 %v1145
        %v1185 = vunpack.c.l.b16 %v1146
        %v1186 = vunpack.c.l.b16 %v1147
        %v1187 = vunpack.c.l.b16 %v1148
        %v1188 = vunpack.c.l.b16 %v1149
        %v1189 = vunpack.c.l.b16 %v1150
        %v1190 = vunpack.c.l.b16 %v1151
        %v1191 = vpack.c.b16 %v1176, %v1175
        %v1192 = vpack.c.b16 %v1178, %v1177
        %v1193 = vpack.c.b16 %v1180, %v1179
        %v1194 = vpack.c.b16 %v1182, %v1181
        %v1195 = vpack.c.b16 %v1184, %v1183
        %v1196 = vpack.c.b16 %v1186, %v1185
        %v1197 = vpack.c.b16 %v1188, %v1187
        %v1198 = vpack.c.b16 %v1190, %v1189
        %1207 = vmatprep.subr.bf16.mxu0 0
        %1208 = vmatpush1.bf16.msra.mxu0 %v1191
        %1209 = vmatprep.subr.bf16.mxu0 0
        %1210 = vmatpush1.bf16.msra.mxu0 %v1192
        %1211 = vmatprep.subr.bf16.mxu0 0
        %1212 = vmatpush1.bf16.msra.mxu0 %v1193
        %1213 = vmatprep.subr.bf16.mxu0 0
        %1214 = vmatpush1.bf16.msra.mxu0 %v1194
        %1215 = vmatprep.subr.bf16.mxu0 0
        %1216 = vmatpush1.bf16.msra.mxu0 %v1195
        %1217 = vmatprep.subr.bf16.mxu0 0
        %1218 = vmatpush1.bf16.msra.mxu0 %v1196
        %1219 = vmatprep.subr.bf16.mxu0 0
        %1220 = vmatpush1.bf16.msra.mxu0 %v1197
        %1221 = vmatprep.subr.bf16.mxu0 0
        %1222 = vmatpush1.bf16.msra.mxu0 %v1198
        %1223 = vmatprep.subr.bf16.mxu0 0
        %1224 = vmatpush1.bf16.msra.mxu0 0
        %1225 = vmatprep.subr.bf16.mxu0 0
        %1226 = vmatpush1.bf16.msra.mxu0 0
        %1227 = vmatprep.subr.bf16.mxu0 0
        %1228 = vmatpush1.bf16.msra.mxu0 0
        %1229 = vmatprep.subr.bf16.mxu0 0
        %1230 = vmatpush1.bf16.msra.mxu0 0
        %1231 = vmatprep.subr.bf16.mxu0 0
        %1232 = vmatpush1.bf16.msra.mxu0 0
        %1233 = vmatprep.subr.bf16.mxu0 0
        %1234 = vmatpush1.bf16.msra.mxu0 0
        %1235 = vmatprep.subr.bf16.mxu0 0
        %1236 = vmatpush1.bf16.msra.mxu0 0
        %1237 = vmatprep.subr.bf16.mxu0 0
        %1238 = vmatpush1.bf16.msra.mxu0 0
        %1239 = vmatprep.mubr.bf16.mxu0 0
        %1240 = vmatmul.mubr.bf16.gmra.mrb[0].mxu0 %v1024
        %v1241 = vpop.f32.mrb[0].mxu0
        %v1242 = vadd.f32 %v1157, %v1241
        %v1243 = vpop.f32.mrb[0].mxu0
        %v1244 = vpop.f32.mrb[0].mxu0
        %v1245 = vpop.f32.mrb[0].mxu0
        %1246 = vdwg.mxu0
        %v1247 = vld [vmem:[%s509] sm:$0xf]
        %v1248 = vld [vmem:[%s509 + $0x4] sm:$0xf]
        %v1249 = vld [vmem:[%s509 + $0x8] sm:$0xf]
        %v1250 = vld [vmem:[%s509 + $0xc] sm:$0xf]
        %v1251 = vld [vmem:[%s509 + $0x10] sm:$0xf]
        %v1252 = vld [vmem:[%s509 + $0x14] sm:$0xf]
        %v1253 = vld [vmem:[%s509 + $0x18] sm:$0xf]
        %v1254 = vld [vmem:[%s509 + $0x1c] sm:$0xf]
        %v1255 = vld [vmem:[%s509 + $0x20] sm:$0xf]
        %v1256 = vld [vmem:[%s509 + $0x24] sm:$0xf]
        %v1257 = vld [vmem:[%s509 + $0x28] sm:$0xf]
        %v1258 = vld [vmem:[%s509 + $0x2c] sm:$0xf]
        %v1259 = vld [vmem:[%s509 + $0x30] sm:$0xf]
        %v1260 = vld [vmem:[%s509 + $0x34] sm:$0xf]
        %v1261 = vld [vmem:[%s509 + $0x38] sm:$0xf]
        %v1262 = vld [vmem:[%s509 + $0x3c] sm:$0xf]
        %v1263 = vld [vmem:[%s526] sm:$0x1]
        %v1265 = vlaneseq
        %v1266 = vshrl.u32 %v1265, 7
        %v1267 = vsub.s32 0, %v1266
        %v1268 = vrot.slane %v1263, %v1267
        %v1286 = vunpack.c.l.b16 %v1247
        %v1287 = vunpack.c.l.b16 %v1248
        %v1288 = vunpack.c.l.b16 %v1249
        %v1289 = vunpack.c.l.b16 %v1250
        %v1290 = vunpack.c.l.b16 %v1251
        %v1291 = vunpack.c.l.b16 %v1252
        %v1292 = vunpack.c.l.b16 %v1253
        %v1293 = vunpack.c.l.b16 %v1254
        %v1294 = vunpack.c.l.b16 %v1255
        %v1295 = vunpack.c.l.b16 %v1256
        %v1296 = vunpack.c.l.b16 %v1257
        %v1297 = vunpack.c.l.b16 %v1258
        %v1298 = vunpack.c.l.b16 %v1259
        %v1299 = vunpack.c.l.b16 %v1260
        %v1300 = vunpack.c.l.b16 %v1261
        %v1301 = vunpack.c.l.b16 %v1262
        %v1302 = vpack.c.b16 %v1287, %v1286
        %v1303 = vpack.c.b16 %v1289, %v1288
        %v1304 = vpack.c.b16 %v1291, %v1290
        %v1305 = vpack.c.b16 %v1293, %v1292
        %v1306 = vpack.c.b16 %v1295, %v1294
        %v1307 = vpack.c.b16 %v1297, %v1296
        %v1308 = vpack.c.b16 %v1299, %v1298
        %v1309 = vpack.c.b16 %v1301, %v1300
        %1318 = vmatprep.subr.bf16.mxu0 0
        %1319 = vmatpush1.bf16.msra.mxu0 %v1302
        %1320 = vmatprep.subr.bf16.mxu0 0
        %1321 = vmatpush1.bf16.msra.mxu0 %v1303
        %1322 = vmatprep.subr.bf16.mxu0 0
        %1323 = vmatpush1.bf16.msra.mxu0 %v1304
        %1324 = vmatprep.subr.bf16.mxu0 0
        %1325 = vmatpush1.bf16.msra.mxu0 %v1305
        %1326 = vmatprep.subr.bf16.mxu0 0
        %1327 = vmatpush1.bf16.msra.mxu0 %v1306
        %1328 = vmatprep.subr.bf16.mxu0 0
        %1329 = vmatpush1.bf16.msra.mxu0 %v1307
        %1330 = vmatprep.subr.bf16.mxu0 0
        %1331 = vmatpush1.bf16.msra.mxu0 %v1308
        %1332 = vmatprep.subr.bf16.mxu0 0
        %1333 = vmatpush1.bf16.msra.mxu0 %v1309
        %1334 = vmatprep.subr.bf16.mxu0 0
        %1335 = vmatpush1.bf16.msra.mxu0 0
        %1336 = vmatprep.subr.bf16.mxu0 0
        %1337 = vmatpush1.bf16.msra.mxu0 0
        %1338 = vmatprep.subr.bf16.mxu0 0
        %1339 = vmatpush1.bf16.msra.mxu0 0
        %1340 = vmatprep.subr.bf16.mxu0 0
        %1341 = vmatpush1.bf16.msra.mxu0 0
        %1342 = vmatprep.subr.bf16.mxu0 0
        %1343 = vmatpush1.bf16.msra.mxu0 0
        %1344 = vmatprep.subr.bf16.mxu0 0
        %1345 = vmatpush1.bf16.msra.mxu0 0
        %1346 = vmatprep.subr.bf16.mxu0 0
        %1347 = vmatpush1.bf16.msra.mxu0 0
        %1348 = vmatprep.subr.bf16.mxu0 0
        %1349 = vmatpush1.bf16.msra.mxu0 0
        %1350 = vmatprep.mubr.bf16.mxu0 0
        %1351 = vmatmul.mubr.bf16.gmra.mrb[0].mxu0 %v1024
        %v1352 = vpop.f32.mrb[0].mxu0
        %v1353 = vadd.f32 %v1268, %v1352
        %v1354 = vpop.f32.mrb[0].mxu0
        %v1355 = vpop.f32.mrb[0].mxu0
        %v1356 = vpop.f32.mrb[0].mxu0
        %1357 = vdwg.mxu0
        %s1358 = scalar_lea.vmem %s247, 16 [#allocation2]
        %v1359 = vld [vmem:[%s1358] sm:$0xff]
        %v1360 = vadd.f32 %v1359, %v1131
        %v1361 = vxor.u32 %v1360, 2147483648
        %v1362 = vmul.f32 %v1361, 1.442695
        %v1363 = vpow.pop %v1362
        %v1364 = vadd.f32 %v1363, 1.0
        %v1365 = vrcp.pop %v1364
        %v1366 = vmul.f32 1.0, %v1365
        %s1367 = scalar_lea.vmem %s247, 48 [#allocation2]
        %v1368 = vld [vmem:[%s1367] sm:$0xff]
        %v1369 = vadd.f32 %v1368, %v1242
        %v1370 = vxor.u32 %v1369, 2147483648
        %v1371 = vmul.f32 %v1370, 1.442695
        %v1372 = vpow.pop %v1371
        %v1373 = vadd.f32 %v1372, 1.0
        %v1374 = vrcp.pop %v1373
        %v1375 = vmul.f32 1.0, %v1374
        %s1376 = scalar_lea.vmem %s247, 80 [#allocation2]
        %v1377 = vld [vmem:[%s1376] sm:$0xff]
        %v1378 = vmul.f32 %v1366, %v1353
        %v1379 = vadd.f32 %v1377, %v1378
        %v1380 = vtanh.pop %v1379
        %v1381 = vsub.f32 1.0, %v1375
        %v1382 = vmul.f32 %v1381, %v1380
        %v1383 = vmul.f32 %v1375, %v1021
        %v1384 = vadd.f32 %v1382, %v1383
        %s1385 = sadd.s32 %s648, 2
        %p1386 = scmp.lt.s32.totalorder %s1385, 8
        %s1387 = scalar_select %p1386, 1, 0
        %v1388 = vstv %s1387
        %vm1389 = vcmp.eq.s32.totalorder %v1388, 1
        %v1390 = vsel %vm1389, %v1384, %v1021
        %s1391 = scalar_lea.vmem %s275, 16
        %1392 = vst [vmem:[%s1391] sm:$0xff] %v1390
        %v1393 = vpack.c.bf16 %v1390, %v1390
        %v1394 = vld [vmem:[%s1] sm:$0xf]
        %v1395 = vld [vmem:[%s1 + $0x4] sm:$0xf]
        %v1396 = vld [vmem:[%s1 + $0x8] sm:$0xf]
        %v1397 = vld [vmem:[%s1 + $0xc] sm:$0xf]
        %v1398 = vld [vmem:[%s1 + $0x10] sm:$0xf]
        %v1399 = vld [vmem:[%s1 + $0x14] sm:$0xf]
        %v1400 = vld [vmem:[%s1 + $0x18] sm:$0xf]
        %v1401 = vld [vmem:[%s1 + $0x1c] sm:$0xf]
        %v1402 = vld [vmem:[%s1 + $0x20] sm:$0xf]
        %v1403 = vld [vmem:[%s1 + $0x24] sm:$0xf]
        %v1404 = vld [vmem:[%s1 + $0x28] sm:$0xf]
        %v1405 = vld [vmem:[%s1 + $0x2c] sm:$0xf]
        %v1406 = vld [vmem:[%s1 + $0x30] sm:$0xf]
        %v1407 = vld [vmem:[%s1 + $0x34] sm:$0xf]
        %v1408 = vld [vmem:[%s1 + $0x38] sm:$0xf]
        %v1409 = vld [vmem:[%s1 + $0x3c] sm:$0xf]
        %v1410 = vld [vmem:[%s2] sm:$0x1]
        %v1412 = vlaneseq
        %v1413 = vshrl.u32 %v1412, 7
        %v1414 = vsub.s32 0, %v1413
        %v1415 = vrot.slane %v1410, %v1414
        %v1433 = vunpack.c.l.b16 %v1394
        %v1434 = vunpack.c.l.b16 %v1395
        %v1435 = vunpack.c.l.b16 %v1396
        %v1436 = vunpack.c.l.b16 %v1397
        %v1437 = vunpack.c.l.b16 %v1398
        %v1438 = vunpack.c.l.b16 %v1399
        %v1439 = vunpack.c.l.b16 %v1400
        %v1440 = vunpack.c.l.b16 %v1401
        %v1441 = vunpack.c.l.b16 %v1402
        %v1442 = vunpack.c.l.b16 %v1403
        %v1443 = vunpack.c.l.b16 %v1404
        %v1444 = vunpack.c.l.b16 %v1405
        %v1445 = vunpack.c.l.b16 %v1406
        %v1446 = vunpack.c.l.b16 %v1407
        %v1447 = vunpack.c.l.b16 %v1408
        %v1448 = vunpack.c.l.b16 %v1409
        %v1449 = vpack.c.b16 %v1434, %v1433
        %v1450 = vpack.c.b16 %v1436, %v1435
        %v1451 = vpack.c.b16 %v1438, %v1437
        %v1452 = vpack.c.b16 %v1440, %v1439
        %v1453 = vpack.c.b16 %v1442, %v1441
        %v1454 = vpack.c.b16 %v1444, %v1443
        %v1455 = vpack.c.b16 %v1446, %v1445
        %v1456 = vpack.c.b16 %v1448, %v1447
        %1465 = vmatprep.subr.bf16.mxu0 0
        %1466 = vmatpush1.bf16.msra.mxu0 %v1449
        %1467 = vmatprep.subr.bf16.mxu0 0
        %1468 = vmatpush1.bf16.msra.mxu0 %v1450
        %1469 = vmatprep.subr.bf16.mxu0 0
        %1470 = vmatpush1.bf16.msra.mxu0 %v1451
        %1471 = vmatprep.subr.bf16.mxu0 0
        %1472 = vmatpush1.bf16.msra.mxu0 %v1452
        %1473 = vmatprep.subr.bf16.mxu0 0
        %1474 = vmatpush1.bf16.msra.mxu0 %v1453
        %1475 = vmatprep.subr.bf16.mxu0 0
        %1476 = vmatpush1.bf16.msra.mxu0 %v1454
        %1477 = vmatprep.subr.bf16.mxu0 0
        %1478 = vmatpush1.bf16.msra.mxu0 %v1455
        %1479 = vmatprep.subr.bf16.mxu0 0
        %1480 = vmatpush1.bf16.msra.mxu0 %v1456
        %1481 = vmatprep.subr.bf16.mxu0 0
        %1482 = vmatpush1.bf16.msra.mxu0 0
        %1483 = vmatprep.subr.bf16.mxu0 0
        %1484 = vmatpush1.bf16.msra.mxu0 0
        %1485 = vmatprep.subr.bf16.mxu0 0
        %1486 = vmatpush1.bf16.msra.mxu0 0
        %1487 = vmatprep.subr.bf16.mxu0 0
        %1488 = vmatpush1.bf16.msra.mxu0 0
        %1489 = vmatprep.subr.bf16.mxu0 0
        %1490 = vmatpush1.bf16.msra.mxu0 0
        %1491 = vmatprep.subr.bf16.mxu0 0
        %1492 = vmatpush1.bf16.msra.mxu0 0
        %1493 = vmatprep.subr.bf16.mxu0 0
        %1494 = vmatpush1.bf16.msra.mxu0 0
        %1495 = vmatprep.subr.bf16.mxu0 0
        %1496 = vmatpush1.bf16.msra.mxu0 0
        %1497 = vmatprep.mubr.bf16.mxu0 0
        %1498 = vmatmul.mubr.bf16.gmra.mrb[0].mxu0 %v1393
        %v1499 = vpop.f32.mrb[0].mxu0
        %v1500 = vadd.f32 %v1415, %v1499
        %v1501 = vpop.f32.mrb[0].mxu0
        %v1502 = vpop.f32.mrb[0].mxu0
        %v1503 = vpop.f32.mrb[0].mxu0
        %1504 = vdwg.mxu0
        %v1505 = vld [vmem:[%s396] sm:$0xf]
        %v1506 = vld [vmem:[%s396 + $0x4] sm:$0xf]
        %v1507 = vld [vmem:[%s396 + $0x8] sm:$0xf]
        %v1508 = vld [vmem:[%s396 + $0xc] sm:$0xf]
        %v1509 = vld [vmem:[%s396 + $0x10] sm:$0xf]
        %v1510 = vld [vmem:[%s396 + $0x14] sm:$0xf]
        %v1511 = vld [vmem:[%s396 + $0x18] sm:$0xf]
        %v1512 = vld [vmem:[%s396 + $0x1c] sm:$0xf]
        %v1513 = vld [vmem:[%s396 + $0x20] sm:$0xf]
        %v1514 = vld [vmem:[%s396 + $0x24] sm:$0xf]
        %v1515 = vld [vmem:[%s396 + $0x28] sm:$0xf]
        %v1516 = vld [vmem:[%s396 + $0x2c] sm:$0xf]
        %v1517 = vld [vmem:[%s396 + $0x30] sm:$0xf]
        %v1518 = vld [vmem:[%s396 + $0x34] sm:$0xf]
        %v1519 = vld [vmem:[%s396 + $0x38] sm:$0xf]
        %v1520 = vld [vmem:[%s396 + $0x3c] sm:$0xf]
        %v1521 = vld [vmem:[%s413] sm:$0x1]
        %v1523 = vlaneseq
        %v1524 = vshrl.u32 %v1523, 7
        %v1525 = vsub.s32 0, %v1524
        %v1526 = vrot.slane %v1521, %v1525
        %v1544 = vunpack.c.l.b16 %v1505
        %v1545 = vunpack.c.l.b16 %v1506
        %v1546 = vunpack.c.l.b16 %v1507
        %v1547 = vunpack.c.l.b16 %v1508
        %v1548 = vunpack.c.l.b16 %v1509
        %v1549 = vunpack.c.l.b16 %v1510
        %v1550 = vunpack.c.l.b16 %v1511
        %v1551 = vunpack.c.l.b16 %v1512
        %v1552 = vunpack.c.l.b16 %v1513
        %v1553 = vunpack.c.l.b16 %v1514
        %v1554 = vunpack.c.l.b16 %v1515
        %v1555 = vunpack.c.l.b16 %v1516
        %v1556 = vunpack.c.l.b16 %v1517
        %v1557 = vunpack.c.l.b16 %v1518
        %v1558 = vunpack.c.l.b16 %v1519
        %v1559 = vunpack.c.l.b16 %v1520
        %v1560 = vpack.c.b16 %v1545, %v1544
        %v1561 = vpack.c.b16 %v1547, %v1546
        %v1562 = vpack.c.b16 %v1549, %v1548
        %v1563 = vpack.c.b16 %v1551, %v1550
        %v1564 = vpack.c.b16 %v1553, %v1552
        %v1565 = vpack.c.b16 %v1555, %v1554
        %v1566 = vpack.c.b16 %v1557, %v1556
        %v1567 = vpack.c.b16 %v1559, %v1558
        %1576 = vmatprep.subr.bf16.mxu0 0
        %1577 = vmatpush1.bf16.msra.mxu0 %v1560
        %1578 = vmatprep.subr.bf16.mxu0 0
        %1579 = vmatpush1.bf16.msra.mxu0 %v1561
        %1580 = vmatprep.subr.bf16.mxu0 0
        %1581 = vmatpush1.bf16.msra.mxu0 %v1562
        %1582 = vmatprep.subr.bf16.mxu0 0
        %1583 = vmatpush1.bf16.msra.mxu0 %v1563
        %1584 = vmatprep.subr.bf16.mxu0 0
        %1585 = vmatpush1.bf16.msra.mxu0 %v1564
        %1586 = vmatprep.subr.bf16.mxu0 0
        %1587 = vmatpush1.bf16.msra.mxu0 %v1565
        %1588 = vmatprep.subr.bf16.mxu0 0
        %1589 = vmatpush1.bf16.msra.mxu0 %v1566
        %1590 = vmatprep.subr.bf16.mxu0 0
        %1591 = vmatpush1.bf16.msra.mxu0 %v1567
        %1592 = vmatprep.subr.bf16.mxu0 0
        %1593 = vmatpush1.bf16.msra.mxu0 0
        %1594 = vmatprep.subr.bf16.mxu0 0
        %1595 = vmatpush1.bf16.msra.mxu0 0
        %1596 = vmatprep.subr.bf16.mxu0 0
        %1597 = vmatpush1.bf16.msra.mxu0 0
        %1598 = vmatprep.subr.bf16.mxu0 0
        %1599 = vmatpush1.bf16.msra.mxu0 0
        %1600 = vmatprep.subr.bf16.mxu0 0
        %1601 = vmatpush1.bf16.msra.mxu0 0
        %1602 = vmatprep.subr.bf16.mxu0 0
        %1603 = vmatpush1.bf16.msra.mxu0 0
        %1604 = vmatprep.subr.bf16.mxu0 0
        %1605 = vmatpush1.bf16.msra.mxu0 0
        %1606 = vmatprep.subr.bf16.mxu0 0
        %1607 = vmatpush1.bf16.msra.mxu0 0
        %1608 = vmatprep.mubr.bf16.mxu0 0
        %1609 = vmatmul.mubr.bf16.gmra.mrb[0].mxu0 %v1393
        %v1610 = vpop.f32.mrb[0].mxu0
        %v1611 = vadd.f32 %v1526, %v1610
        %v1612 = vpop.f32.mrb[0].mxu0
        %v1613 = vpop.f32.mrb[0].mxu0
        %v1614 = vpop.f32.mrb[0].mxu0
        %1615 = vdwg.mxu0
        %v1616 = vld [vmem:[%s509] sm:$0xf]
        %v1617 = vld [vmem:[%s509 + $0x4] sm:$0xf]
        %v1618 = vld [vmem:[%s509 + $0x8] sm:$0xf]
        %v1619 = vld [vmem:[%s509 + $0xc] sm:$0xf]
        %v1620 = vld [vmem:[%s509 + $0x10] sm:$0xf]
        %v1621 = vld [vmem:[%s509 + $0x14] sm:$0xf]
        %v1622 = vld [vmem:[%s509 + $0x18] sm:$0xf]
        %v1623 = vld [vmem:[%s509 + $0x1c] sm:$0xf]
        %v1624 = vld [vmem:[%s509 + $0x20] sm:$0xf]
        %v1625 = vld [vmem:[%s509 + $0x24] sm:$0xf]
        %v1626 = vld [vmem:[%s509 + $0x28] sm:$0xf]
        %v1627 = vld [vmem:[%s509 + $0x2c] sm:$0xf]
        %v1628 = vld [vmem:[%s509 + $0x30] sm:$0xf]
        %v1629 = vld [vmem:[%s509 + $0x34] sm:$0xf]
        %v1630 = vld [vmem:[%s509 + $0x38] sm:$0xf]
        %v1631 = vld [vmem:[%s509 + $0x3c] sm:$0xf]
        %v1632 = vld [vmem:[%s526] sm:$0x1]
        %v1634 = vlaneseq
        %v1635 = vshrl.u32 %v1634, 7
        %v1636 = vsub.s32 0, %v1635
        %v1637 = vrot.slane %v1632, %v1636
        %v1655 = vunpack.c.l.b16 %v1616
        %v1656 = vunpack.c.l.b16 %v1617
        %v1657 = vunpack.c.l.b16 %v1618
        %v1658 = vunpack.c.l.b16 %v1619
        %v1659 = vunpack.c.l.b16 %v1620
        %v1660 = vunpack.c.l.b16 %v1621
        %v1661 = vunpack.c.l.b16 %v1622
        %v1662 = vunpack.c.l.b16 %v1623
        %v1663 = vunpack.c.l.b16 %v1624
        %v1664 = vunpack.c.l.b16 %v1625
        %v1665 = vunpack.c.l.b16 %v1626
        %v1666 = vunpack.c.l.b16 %v1627
        %v1667 = vunpack.c.l.b16 %v1628
        %v1668 = vunpack.c.l.b16 %v1629
        %v1669 = vunpack.c.l.b16 %v1630
        %v1670 = vunpack.c.l.b16 %v1631
        %v1671 = vpack.c.b16 %v1656, %v1655
        %v1672 = vpack.c.b16 %v1658, %v1657
        %v1673 = vpack.c.b16 %v1660, %v1659
        %v1674 = vpack.c.b16 %v1662, %v1661
        %v1675 = vpack.c.b16 %v1664, %v1663
        %v1676 = vpack.c.b16 %v1666, %v1665
        %v1677 = vpack.c.b16 %v1668, %v1667
        %v1678 = vpack.c.b16 %v1670, %v1669
        %1687 = vmatprep.subr.bf16.mxu0 0
        %1688 = vmatpush1.bf16.msra.mxu0 %v1671
        %1689 = vmatprep.subr.bf16.mxu0 0
        %1690 = vmatpush1.bf16.msra.mxu0 %v1672
        %1691 = vmatprep.subr.bf16.mxu0 0
        %1692 = vmatpush1.bf16.msra.mxu0 %v1673
        %1693 = vmatprep.subr.bf16.mxu0 0
        %1694 = vmatpush1.bf16.msra.mxu0 %v1674
        %1695 = vmatprep.subr.bf16.mxu0 0
        %1696 = vmatpush1.bf16.msra.mxu0 %v1675
        %1697 = vmatprep.subr.bf16.mxu0 0
        %1698 = vmatpush1.bf16.msra.mxu0 %v1676
        %1699 = vmatprep.subr.bf16.mxu0 0
        %1700 = vmatpush1.bf16.msra.mxu0 %v1677
        %1701 = vmatprep.subr.bf16.mxu0 0
        %1702 = vmatpush1.bf16.msra.mxu0 %v1678
        %1703 = vmatprep.subr.bf16.mxu0 0
        %1704 = vmatpush1.bf16.msra.mxu0 0
        %1705 = vmatprep.subr.bf16.mxu0 0
        %1706 = vmatpush1.bf16.msra.mxu0 0
        %1707 = vmatprep.subr.bf16.mxu0 0
        %1708 = vmatpush1.bf16.msra.mxu0 0
        %1709 = vmatprep.subr.bf16.mxu0 0
        %1710 = vmatpush1.bf16.msra.mxu0 0
        %1711 = vmatprep.subr.bf16.mxu0 0
        %1712 = vmatpush1.bf16.msra.mxu0 0
        %1713 = vmatprep.subr.bf16.mxu0 0
        %1714 = vmatpush1.bf16.msra.mxu0 0
        %1715 = vmatprep.subr.bf16.mxu0 0
        %1716 = vmatpush1.bf16.msra.mxu0 0
        %1717 = vmatprep.subr.bf16.mxu0 0
        %1718 = vmatpush1.bf16.msra.mxu0 0
        %1719 = vmatprep.mubr.bf16.mxu0 0
        %1720 = vmatmul.mubr.bf16.gmra.mrb[0].mxu0 %v1393
        %v1721 = vpop.f32.mrb[0].mxu0
        %v1722 = vadd.f32 %v1637, %v1721
        %v1723 = vpop.f32.mrb[0].mxu0
        %v1724 = vpop.f32.mrb[0].mxu0
        %v1725 = vpop.f32.mrb[0].mxu0
        %1726 = vdwg.mxu0
        %s1727 = scalar_lea.vmem %s247, 24 [#allocation2]
        %v1728 = vld [vmem:[%s1727] sm:$0xff]
        %v1729 = vadd.f32 %v1728, %v1500
        %v1730 = vxor.u32 %v1729, 2147483648
        %v1731 = vmul.f32 %v1730, 1.442695
        %v1732 = vpow.pop %v1731
        %v1733 = vadd.f32 %v1732, 1.0
        %v1734 = vrcp.pop %v1733
        %v1735 = vmul.f32 1.0, %v1734
        %s1736 = scalar_lea.vmem %s247, 56 [#allocation2]
        %v1737 = vld [vmem:[%s1736] sm:$0xff]
        %v1738 = vadd.f32 %v1737, %v1611
        %v1739 = vxor.u32 %v1738, 2147483648
        %v1740 = vmul.f32 %v1739, 1.442695
        %v1741 = vpow.pop %v1740
        %v1742 = vadd.f32 %v1741, 1.0
        %v1743 = vrcp.pop %v1742
        %v1744 = vmul.f32 1.0, %v1743
        %s1745 = scalar_lea.vmem %s247, 88 [#allocation2]
        %v1746 = vld [vmem:[%s1745] sm:$0xff]
        %v1747 = vmul.f32 %v1735, %v1722
        %v1748 = vadd.f32 %v1746, %v1747
        %v1749 = vtanh.pop %v1748
        %v1750 = vsub.f32 1.0, %v1744
        %v1751 = vmul.f32 %v1750, %v1749
        %v1752 = vmul.f32 %v1744, %v1390
        %v1753 = vadd.f32 %v1751, %v1752
        %s1754 = sadd.s32 %s648, 3
        %p1755 = scmp.lt.s32.totalorder %s1754, 8
        %s1756 = scalar_select %p1755, 1, 0
        %v1757 = vstv %s1756
        %vm1758 = vcmp.eq.s32.totalorder %v1757, 1
        %v1759 = vsel %vm1758, %v1753, %v1390
        %s1760 = scalar_lea.vmem %s275, 24
        %1761 = vst [vmem:[%s1760] sm:$0xff] %v1759
        %1762 = vst [vmem:[%s4] sm:$0xff] %v1759
        %s1763 = smul.u32 4, %s16
        %p1764 = scmp.lt.s32.totalorder %s1763, 7
        %s1765 = scalar_select %p1764, %s1763, 7
        %s1766 = smul.addr %s1765, 8
        %s1767 = scalar_lea.vmem %s3, %s1766
        // Predicated region
        $region75: #{encoder_forward.1} parent=65 // pred_check
          %p1768 = pneg %p102
        $region76: #{encoder_forward.1} parent=65 // pred_check_branch
          %1770 = sbr.rel (%p1768) target = $region78
        $region77: #{encoder_forward.1} parent=65 // pred_region
          %s1771 = smul.u32 4, %s16
        $region78: #{encoder_forward.1} parent=65 // pred_fallthru
          _
        // Predicated region
        $region79: #{encoder_forward.1} parent=65 // pred_check
          %p1772 = pneg %p123
        $region80: #{encoder_forward.1} parent=65 // pred_check_branch
          %1774 = sbr.rel (%p1772) target = $region82
        $region81: #{encoder_forward.1} parent=65 // pred_region
          _
        $region82: #{encoder_forward.1} parent=65 // pred_fallthru
          _
        // Predicated region
        $region83: #{encoder_forward.1} parent=65 // pred_check
          %p1775 = pneg %p123
        $region84: #{encoder_forward.1} parent=65 // pred_check_branch
          %1777 = sbr.rel (%p1775) target = $region86
        $region85: #{encoder_forward.1} parent=65 // pred_region
          _
        $region86: #{encoder_forward.1} parent=65 // pred_fallthru
          _
      $region66: #{encoder_forward.1} parent=5 // pred_fallthru
        _
      %p1778 = scmp.le.s32.totalorder 2, %s11
      // Predicated region
      $region87: #{encoder_forward.1} parent=5 // pred_check
        %p1779 = pneg %p1778
      $region88: #{encoder_forward.1} parent=5 // pred_check_branch
        %1781 = sbr.rel (%p1779) target = $region90
      $region89: #{encoder_forward.1} parent=5 // pred_region
        %s1782 = ssub.s32 %s11, 2
        // Predicated region
        $region91: #{encoder_forward.1} parent=89 // pred_check
          %p1783 = pneg %p108
        $region92: #{encoder_forward.1} parent=89 // pred_check_branch
          %1785 = sbr.rel (%p1783) target = $region94
        $region93: #{encoder_forward.1} parent=89 // pred_region
          %s1786 = smul.u32 4, %s17
          %p1787 = scmp.lt.s32.totalorder %s1786, 7
          %s1788 = scalar_select %p1787, %s1786, 7
          %s1789 = smul.addr %s1788, 8
          %s1790 = scalar_lea.vmem %s3, %s1789
        $region94: #{encoder_forward.1} parent=89 // pred_fallthru
          _
      $region90: #{encoder_forward.1} parent=5 // pred_fallthru
        _
    $region6: #{encoder_forward.1} parent=1 // loop_footer
      %s15 = sadd.s32 1, %s11
    $region7: #{encoder_forward.1} parent=1 // loop_footer_branch
      %10 = sbr.rel target = $region3
    $region8: #{encoder_forward.1} parent=1 // loop_exit
      _

</llo_original>
